<compile_context>
chip_gen: v7x
topology: tpu7x:2x2x1
jax: 0.10.0
libtpu: 0.0.40
codegen_flags: <defaults>
</compile_context>

<pallas_src>
import functools
import math

import jax
import jax.numpy as jnp
from jax.experimental import pallas as pl
from jax.experimental.pallas import tpu as pltpu


# ----------------------------- kernel helpers ------------------------------ #

def _layer_norm(v, g, b, eps=1e-12):
    mu = jnp.mean(v, axis=-1, keepdims=True)
    var = jnp.mean((v - mu) ** 2, axis=-1, keepdims=True)
    return (v - mu) * jax.lax.rsqrt(var + eps) * g + b


def _gelu(x):
    # tanh approximation (EUP-friendly).  Slightly differs from HF's exact erf GELU.
    c = math.sqrt(2.0 / math.pi)
    return 0.5 * x * (1.0 + jnp.tanh(c * (x + 0.044715 * x * x * x)))


def _vmem_limit_bytes():
    """Chip-aware scoped-VMEM limit (v6e/v5e: ~96MB; v7x: ~48MB; unknown: 48MB)."""
    cap = None
    try:
        info = pltpu.get_tpu_info()
        cap = getattr(info, "vmem_capacity_bytes", None)
    except Exception:
        cap = None
    if not cap:
        return 48 * 1024 * 1024
    return min(int(cap) * 3 // 4, 100 * 1024 * 1024)


# ----------------------------- Pallas kernel ------------------------------- #

def encoder_stack_kernel(x_ref, mask_ref,
                         wqkv_ref, bqkv_ref, wo_ref, bo_ref,
                         ln1_g_ref, ln1_b_ref,
                         w1_ref, b1_ref, w2_ref, b2_ref,
                         ln2_g_ref, ln2_b_ref,
                         out_ref, act_ref, *, n_heads, ffn_chunk):
    """One grid step = one (batch-tile, layer) pair.

    grid = (B // bt, L); layer axis is 'arbitrary' (must stay last + in-order)
    and activations stay resident in `act_ref` (VMEM scratch) across it.
    Weights arrive as the current layer's [1, ...] slice of the stacked
    [L, ...] arrays (bf16 for MXU operands, f32 for biases / LN params).
    """
    l = pl.program_id(1)
    n_layers = pl.num_programs(1)
    Bt, S, H = act_ref.shape
    hd = H // n_heads
    F = w1_ref.shape[-1]

    # Seed the resident activation slab from the (bf16) embeddings on layer 0.
    @pl.when(l == 0)
    def _():
        act_ref[...] = x_ref[...].astype(jnp.float32)

    x = act_ref[...]                              # [Bt, S, H] f32 (resident)
    x2 = x.reshape(Bt * S, H)                     # fold batch into matmul M dim
    x2_bf = x2.astype(jnp.bfloat16)

    # --- self attention (fused QKV; 1/sqrt(hd) folded into Q weights) ------ #
    qkv = jnp.dot(x2_bf, wqkv_ref[0],
                  preferred_element_type=jnp.float32) + bqkv_ref[0]   # [Bt*S, 3H]
    q3 = qkv[:, 0 * H:1 * H].reshape(Bt, S, H)
    k3 = qkv[:, 1 * H:2 * H].reshape(Bt, S, H)
    v3 = qkv[:, 2 * H:3 * H].reshape(Bt, S, H)
    mask = mask_ref[...]                          # [Bt, 1, S] additive, f32

    attn_out = jnp.zeros((Bt * S, H), jnp.float32)
    # TODO(synk): for high head counts (e.g. 12) convert this static unroll to a
    # lax.fori_loop over a VMEM-staged per-head layout to bound vreg live ranges.
    for h in range(n_heads):                      # static unroll over heads
        sl = slice(h * hd, (h + 1) * hd)
        qh = q3[:, :, sl].astype(jnp.bfloat16)    # [Bt, S, hd]
        kh = k3[:, :, sl].astype(jnp.bfloat16)
        vh = v3[:, :, sl].astype(jnp.bfloat16)
        s = jnp.einsum('bqd,bkd->bqk', qh, kh,
                       preferred_element_type=jnp.float32) + mask      # [Bt,S,S]
        s = s - jnp.max(s, axis=-1, keepdims=True)
        p = jnp.exp(s)
        p = p * pl.reciprocal(jnp.sum(p, axis=-1, keepdims=True), approx=True)
        ctx = jnp.einsum('bqk,bkd->bqd', p.astype(jnp.bfloat16), vh,
                         preferred_element_type=jnp.float32)            # [Bt,S,hd]
        # Accumulate the output projection per head: removes the [Bt,S,H] slab
        # and the masked partial-lane per-head stores (hd < 128).
        attn_out = attn_out + jnp.dot(
            ctx.reshape(Bt * S, hd).astype(jnp.bfloat16),
            wo_ref[0, sl, :], preferred_element_type=jnp.float32)

    attn_out = attn_out + bo_ref[0]
    h1 = _layer_norm(x2 + attn_out, ln1_g_ref[0], ln1_b_ref[0])        # [Bt*S, H]
    h1_bf = h1.astype(jnp.bfloat16)

    # --- feed forward (F-chunked; bf16 intermediate) ----------------------- #
    ff_out = jnp.zeros((Bt * S, H), jnp.float32)
    for f0 in range(0, F, ffn_chunk):             # static chunking over F
        w1c = w1_ref[0, :, f0:f0 + ffn_chunk]     # [H, Fc] bf16
        b1c = b1_ref[0, :, f0:f0 + ffn_chunk]     # [1, Fc] f32
        w2c = w2_ref[0, f0:f0 + ffn_chunk, :]     # [Fc, H] bf16
        ff = _gelu(jnp.dot(h1_bf, w1c, preferred_element_type=jnp.float32) + b1c)
        ff_out = ff_out + jnp.dot(ff.astype(jnp.bfloat16), w2c,
                                  preferred_element_type=jnp.float32)
    out = _layer_norm(h1 + ff_out + b2_ref[0], ln2_g_ref[0], ln2_b_ref[0])

    # keep activations resident for the next layer
    act_ref[...] = out.reshape(Bt, S, H)

    # only the CLS row leaves VMEM, and only after the last layer
    @pl.when(l == n_layers - 1)
    def _():
        out_ref[...] = out.reshape(Bt, S, H)[:, 0:1, :].astype(out_ref.dtype)


def encoder_stack(x, add_mask, p, *, n_heads, block_b, cost_estimate=None):
    """Run the full L-layer encoder in one pallas_call; return CLS embeds [B, H]."""
    B, S, H = x.shape
    L = p["wqkv"].shape[0]
    F = p["w1"].shape[2]
    bt = block_b
    assert B % bt == 0 and H % n_heads == 0
    # TODO(synk): on v7x, additionally stream w1/w2 F-chunks via a third
    # 'arbitrary' grid axis so their VMEM residency is bounded by the chunk.
    ffn_chunk = 1024 if (F > 2048 and F % 1024 == 0) else F

    def wspec(*shape):
        n = len(shape)
        # stacked per-layer weights [L, *shape]; stream layer l's slice each step
        return pl.BlockSpec((1,) + tuple(shape),
                            lambda b, l, _n=n: (l,) + (0,) * _n)

    in_specs = [
        pl.BlockSpec((bt, S, H), lambda b, l: (b, 0, 0)),   # x (bf16, read at l==0)
        pl.BlockSpec((bt, 1, S), lambda b, l: (b, 0, 0)),   # additive mask
        wspec(H, 3 * H), wspec(1, 3 * H),                   # wqkv, bqkv
        wspec(H, H), wspec(1, H),                           # wo, bo
        wspec(1, H), wspec(1, H),                           # ln1 gamma, beta
        wspec(H, F), wspec(1, F),                           # w1, b1
        wspec(F, H), wspec(1, H),                           # w2, b2
        wspec(1, H), wspec(1, H),                           # ln2 gamma, beta
    ]

    out = pl.pallas_call(
        functools.partial(encoder_stack_kernel, n_heads=n_heads,
                          ffn_chunk=ffn_chunk),
        out_shape=jax.ShapeDtypeStruct((B, 1, H), jnp.float32),
        grid=(B // bt, L),
        in_specs=in_specs,
        out_specs=pl.BlockSpec((bt, 1, H), lambda b, l: (b, 0, 0)),
        scratch_shapes=[pltpu.VMEM((bt, S, H), jnp.float32)],  # resident activations
        compiler_params=pltpu.CompilerParams(
            # TODO(synk): on v7x consider pltpu.CORE_PARALLEL on the batch axis
            # (keep B//bt >= 2) to guarantee both TensorCores are used.
            dimension_semantics=("parallel", "arbitrary"),
            vmem_limit_bytes=_vmem_limit_bytes()),
        cost_estimate=cost_estimate,
    )(x, add_mask,
      p["wqkv"], p["bqkv"], p["wo"], p["bo"], p["ln1_g"], p["ln1_b"],
      p["w1"], p["b1"], p["w2"], p["b2"], p["ln2_g"], p["ln2_b"])
    return out[:, 0, :]                                      # [B, H] CLS embeds


# ----------------------------- encoder glue -------------------------------- #

def make_encoder(key, *, num_layers, vocab, max_seq, H, F, n_heads):
    """Synthetic stand-in for AutoModel.from_pretrained(...).encoder weights."""
    k_emb, k_pos, k_layers = jax.random.split(key, 3)
    emb = (0.02 * jax.random.normal(k_emb, (vocab, H))).astype(jnp.float32)
    pos = (0.02 * jax.random.normal(k_pos, (max_seq, H))).astype(jnp.float32)

    hd = H // n_heads
    scale = 1.0 / math.sqrt(hd)
    L = num_layers
    ks = jax.random.split(k_layers, 6)

    def w(k, shape):
        return 0.02 * jax.random.normal(k, shape)

    # Fused QKV with the softmax scale folded into the Q projection.
    wq = w(ks[0], (L, H, H)) * scale
    wk = w(ks[1], (L, H, H))
    wv = w(ks[2], (L, H, H))
    wqkv = jnp.concatenate([wq, wk, wv], axis=-1).astype(jnp.bfloat16)  # [L,H,3H]

    layers = dict(
        wqkv=wqkv, bqkv=jnp.zeros((L, 1, 3 * H), jnp.float32),
        wo=w(ks[3], (L, H, H)).astype(jnp.bfloat16),
        bo=jnp.zeros((L, 1, H), jnp.float32),
        ln1_g=jnp.ones((L, 1, H), jnp.float32),
        ln1_b=jnp.zeros((L, 1, H), jnp.float32),
        w1=w(ks[4], (L, H, F)).astype(jnp.bfloat16),
        b1=jnp.zeros((L, 1, F), jnp.float32),
        w2=w(ks[5], (L, F, H)).astype(jnp.bfloat16),
        b2=jnp.zeros((L, 1, H), jnp.float32),
        ln2_g=jnp.ones((L, 1, H), jnp.float32),
        ln2_b=jnp.zeros((L, 1, H), jnp.float32),
    )
    return dict(emb=emb, pos=pos, layers=layers, n_heads=n_heads)


def _choose_block_b(B, S, H, *, max_block_b=None, target_tokens=2048,
                    act_vmem_budget=16 * 1024 * 1024):
    """Largest divisor of B with bt*S >= ~target_tokens, inside a VMEM budget."""
    per_seq_bytes = S * H * (4 + 2 * 2)          # f32 act slab + bf16 x double-buf
    max_bt_vmem = max(1, act_vmem_budget // per_seq_bytes)
    want = min(B, max(1, -(-target_tokens // S)), max_bt_vmem)
    if max_block_b is not None:
        want = min(want, max(1, int(max_block_b)))
    for bt in range(want, 0, -1):                # divisor fallback: no assert on odd B
        if B % bt == 0:
            return bt
    return 1


def run_encoder(batch, params, *, block_b=None):
    """encoder(**batch).last_hidden_state[:, 0] for the synthetic encoder."""
    ids = batch["input_ids"]                               # [B, S] int32
    mask = batch["attention_mask"].astype(jnp.float32)     # [B, S]
    B, S = ids.shape
    H = params["emb"].shape[1]
    n_heads = params["n_heads"]
    layers = params["layers"]
    L = layers["wqkv"].shape[0]
    F = layers["w1"].shape[2]

    x = jnp.take(params["emb"], ids, axis=0) + params["pos"][None, :S, :]
    add_mask = ((1.0 - mask) * -1e9)[:, None, :]           # [B, 1, S]
    bt = _choose_block_b(B, S, H, max_block_b=block_b)

    # Advisory cost estimate (matmuls + attention flops; weight traffic scales
    # with the number of batch tiles because weights are re-streamed per tile).
    weight_bytes = sum(int(v.size) * v.dtype.itemsize for v in layers.values())
    flops = 2 * L * B * S * (H * 3 * H + H * H + 2 * S * H + 2 * H * F)
    transc = L * B * S * (n_heads * S + F)
    bytes_accessed = (weight_bytes * (B // bt)
                      + B * S * H * 2 + B * S * 4 + B * H * 4)
    ce = pl.CostEstimate(flops=int(flops), transcendentals=int(transc),
                         bytes_accessed=int(bytes_accessed))

    return encoder_stack(x.astype(jnp.bfloat16), add_mask, layers,
                         n_heads=n_heads, block_b=bt, cost_estimate=ce)


def bi_encoder_forward(completion, contexts, comp_params, ctx_params):
    """Mirrors BiEncoderModel.forward."""
    completion_embeds = run_encoder(completion, comp_params)

    context_embeds_list = []
    if contexts:
        # All contexts share the same context_encoder -> one fused batch sweep.
        ctx_ids = jnp.concatenate([c["input_ids"] for c in contexts], axis=0)
        ctx_mask = jnp.concatenate([c["attention_mask"] for c in contexts], axis=0)
        all_ctx = run_encoder({"input_ids": ctx_ids, "attention_mask": ctx_mask},
                              ctx_params)
        start = 0
        for c in contexts:
            n = c["input_ids"].shape[0]
            context_embeds_list.append(all_ctx[start:start + n])
            start += n

    return completion_embeds, context_embeds_list


# --------------------------------- main ------------------------------------ #

if __name__ == "__main__":
    B, S, H, NH, F, V, L = 2, 8, 32, 2, 64, 100, 2

    key = jax.random.PRNGKey(0)
    k_comp, k_ctx, k_ids = jax.random.split(key, 3)

    # two independent encoders (completion_encoder / context_encoder)
    comp_params = make_encoder(k_comp, num_layers=L, vocab=V, max_seq=S,
                               H=H, F=F, n_heads=NH)
    ctx_params = make_encoder(k_ctx, num_layers=L, vocab=V, max_seq=S,
                              H=H, F=F, n_heads=NH)

    def make_batch(k):
        ids = jax.random.randint(k, (B, S), 0, V, dtype=jnp.int32)
        mask = jnp.ones((B, S), dtype=jnp.int32)
        return {"input_ids": ids, "attention_mask": mask}

    k1, k2, k3 = jax.random.split(k_ids, 3)
    completion = make_batch(k1)
    contexts = [make_batch(k2), make_batch(k3)]

    comp_emb, ctx_embs = bi_encoder_forward(
        completion, contexts, comp_params, ctx_params)

    comp_emb = jax.block_until_ready(comp_emb)
    ctx_embs = [jax.block_until_ready(e) for e in ctx_embs]

    assert comp_emb.shape == (B, H)
    assert len(ctx_embs) == 2 and all(e.shape == (B, H) for e in ctx_embs)
    assert bool(jnp.all(jnp.isfinite(comp_emb)))
    assert all(bool(jnp.all(jnp.isfinite(e))) for e in ctx_embs)
    print("KERNEL_OK")
</pallas_src>

<mosaic_0001>
module attributes {stable_mosaic.version = 11 : i64} {
  func.func @encoder_stack_kernel(%arg0: i32, %arg1: i32, %arg2: memref<2x8x32xbf16, #tpu.memory_space<vmem>>, %arg3: memref<2x1x8xf32, #tpu.memory_space<vmem>>, %arg4: memref<1x32x96xbf16, #tpu.memory_space<vmem>>, %arg5: memref<1x1x96xf32, #tpu.memory_space<vmem>>, %arg6: memref<1x32x32xbf16, #tpu.memory_space<vmem>>, %arg7: memref<1x1x32xf32, #tpu.memory_space<vmem>>, %arg8: memref<1x1x32xf32, #tpu.memory_space<vmem>>, %arg9: memref<1x1x32xf32, #tpu.memory_space<vmem>>, %arg10: memref<1x32x64xbf16, #tpu.memory_space<vmem>>, %arg11: memref<1x1x64xf32, #tpu.memory_space<vmem>>, %arg12: memref<1x64x32xbf16, #tpu.memory_space<vmem>>, %arg13: memref<1x1x32xf32, #tpu.memory_space<vmem>>, %arg14: memref<1x1x32xf32, #tpu.memory_space<vmem>>, %arg15: memref<1x1x32xf32, #tpu.memory_space<vmem>>, %arg16: memref<2x1x32xf32, #tpu.memory_space<vmem>>, %arg17: memref<2x8x32xf32, #tpu.memory_space<vmem>>) attributes {dimension_semantics = [#tpu.dimension_semantics<parallel>, #tpu.dimension_semantics<arbitrary>], iteration_bounds = array<i64: 1, 2>, scalar_prefetch = 0 : i64, scratch_operands = 1 : i64, tpu.core_type = #tpu.core_type<tc>, window_params = [{transform_indices = @transform_0, window_bounds = array<i64: 2, 8, 32>}, {transform_indices = @transform_1, window_bounds = array<i64: 2, 1, 8>}, {transform_indices = @transform_2, window_bounds = array<i64: 1, 32, 96>}, {transform_indices = @transform_3, window_bounds = array<i64: 1, 1, 96>}, {transform_indices = @transform_4, window_bounds = array<i64: 1, 32, 32>}, {transform_indices = @transform_5, window_bounds = array<i64: 1, 1, 32>}, {transform_indices = @transform_6, window_bounds = array<i64: 1, 1, 32>}, {transform_indices = @transform_7, window_bounds = array<i64: 1, 1, 32>}, {transform_indices = @transform_8, window_bounds = array<i64: 1, 32, 64>}, {transform_indices = @transform_9, window_bounds = array<i64: 1, 1, 64>}, {transform_indices = @transform_10, window_bounds = array<i64: 1, 64, 32>}, {transform_indices = @transform_11, window_bounds = array<i64: 1, 1, 32>}, {transform_indices = @transform_12, window_bounds = array<i64: 1, 1, 32>}, {transform_indices = @transform_13, window_bounds = array<i64: 1, 1, 32>}, {transform_indices = @transform_14, window_bounds = array<i64: 2, 1, 32>}]} {
    %c0_i32 = arith.constant 0 : i32
    %0 = arith.cmpi eq, %arg1, %c0_i32 : i32
    %1 = arith.extui %0 : i1 to i32
    %c0_i32_0 = arith.constant 0 : i32
    %2 = arith.cmpi ne, %1, %c0_i32_0 : i32
    scf.if %2 {
      %c0_76 = arith.constant 0 : index
      %c0_77 = arith.constant 0 : index
      %c0_78 = arith.constant 0 : index
      %169 = vector.load %arg2[%c0_76, %c0_77, %c0_78] : memref<2x8x32xbf16, #tpu.memory_space<vmem>>, vector<2x8x32xbf16>
      %170 = arith.extf %169 : vector<2x8x32xbf16> to vector<2x8x32xf32>
      %c0_79 = arith.constant 0 : index
      %c0_80 = arith.constant 0 : index
      %c0_81 = arith.constant 0 : index
      %171 = vector.load %arg17[%c0_79, %c0_80, %c0_81] : memref<2x8x32xf32, #tpu.memory_space<vmem>>, vector<2x8x32xf32>
      tpu.vector_store %arg17[%c0_79, %c0_80, %c0_81], %170 {strides = array<i32>} : memref<2x8x32xf32, #tpu.memory_space<vmem>>, vector<2x8x32xf32>,
    } else {
    }
    %c0 = arith.constant 0 : index
    %c0_1 = arith.constant 0 : index
    %c0_2 = arith.constant 0 : index
    %3 = vector.load %arg17[%c0, %c0_1, %c0_2] : memref<2x8x32xf32, #tpu.memory_space<vmem>>, vector<2x8x32xf32>
    %4 = vector.shape_cast %3 : vector<2x8x32xf32> to vector<16x32xf32>
    %5 = arith.truncf %4 : vector<16x32xf32> to vector<16x32xbf16>
    %c0_3 = arith.constant 0 : index
    %c0_4 = arith.constant 0 : index
    %c0_5 = arith.constant 0 : index
    %6 = vector.load %arg4[%c0_3, %c0_4, %c0_5] : memref<1x32x96xbf16, #tpu.memory_space<vmem>>, vector<1x32x96xbf16>
    %7 = vector.shape_cast %6 : vector<1x32x96xbf16> to vector<32x96xbf16>
    %cst = arith.constant dense<0.000000e+00> : vector<16x96xf32>
    %8 = tpu.matmul %5, %7, %cst {dimension_numbers = #tpu.dot_dimension_numbers<[1], [0], [0], [1], [0, 0, 1, 1], [], []>} : vector<16x32xbf16>, vector<32x96xbf16>, vector<16x96xf32> -> vector<16x96xf32>
    %c0_6 = arith.constant 0 : index
    %c0_7 = arith.constant 0 : index
    %c0_8 = arith.constant 0 : index
    %9 = vector.load %arg5[%c0_6, %c0_7, %c0_8] : memref<1x1x96xf32, #tpu.memory_space<vmem>>, vector<1x1x96xf32>
    %10 = vector.shape_cast %9 : vector<1x1x96xf32> to vector<1x96xf32>
    %11 = vector.broadcast %10 : vector<1x96xf32> to vector<16x96xf32>
    %12 = arith.addf %8, %11 : vector<16x96xf32>
    %13 = vector.extract_strided_slice %12 {offsets = [0, 0], sizes = [16, 32], strides = [1, 1]} : vector<16x96xf32> to vector<16x32xf32>
    %14 = vector.shape_cast %13 : vector<16x32xf32> to vector<2x8x32xf32>
    %15 = vector.extract_strided_slice %12 {offsets = [0, 32], sizes = [16, 32], strides = [1, 1]} : vector<16x96xf32> to vector<16x32xf32>
    %16 = vector.shape_cast %15 : vector<16x32xf32> to vector<2x8x32xf32>
    %17 = vector.extract_strided_slice %12 {offsets = [0, 64], sizes = [16, 32], strides = [1, 1]} : vector<16x96xf32> to vector<16x32xf32>
    %18 = vector.shape_cast %17 : vector<16x32xf32> to vector<2x8x32xf32>
    %c0_9 = arith.constant 0 : index
    %c0_10 = arith.constant 0 : index
    %c0_11 = arith.constant 0 : index
    %19 = vector.load %arg3[%c0_9, %c0_10, %c0_11] : memref<2x1x8xf32, #tpu.memory_space<vmem>>, vector<2x1x8xf32>
    %cst_12 = arith.constant 0.000000e+00 : f32
    %20 = vector.broadcast %cst_12 : f32 to vector<16x32xf32>
    %21 = vector.extract_strided_slice %14 {offsets = [0, 0, 0], sizes = [2, 8, 16], strides = [1, 1, 1]} : vector<2x8x32xf32> to vector<2x8x16xf32>
    %22 = arith.truncf %21 : vector<2x8x16xf32> to vector<2x8x16xbf16>
    %23 = vector.extract_strided_slice %16 {offsets = [0, 0, 0], sizes = [2, 8, 16], strides = [1, 1, 1]} : vector<2x8x32xf32> to vector<2x8x16xf32>
    %24 = arith.truncf %23 : vector<2x8x16xf32> to vector<2x8x16xbf16>
    %25 = vector.extract_strided_slice %18 {offsets = [0, 0, 0], sizes = [2, 8, 16], strides = [1, 1, 1]} : vector<2x8x32xf32> to vector<2x8x16xf32>
    %26 = arith.truncf %25 : vector<2x8x16xf32> to vector<2x8x16xbf16>
    "tpu.trace_start"() <{level = 10 : i32, message = "bqd,bkd->bqk"}> : () -> ()
    %cst_13 = arith.constant dense<0.000000e+00> : vector<2x8x8xf32>
    %27 = tpu.matmul %22, %24, %cst_13 {dimension_numbers = #tpu.dot_dimension_numbers<[2], [2], [1], [1], [0, 0, 0, 1, 1, 1], [0], [0]>} : vector<2x8x16xbf16>, vector<2x8x16xbf16>, vector<2x8x8xf32> -> vector<2x8x8xf32>
    "tpu.trace_stop"() : () -> ()
    %28 = vector.broadcast %19 : vector<2x1x8xf32> to vector<2x8x8xf32>
    %29 = arith.addf %27, %28 : vector<2x8x8xf32>
    %cst_14 = arith.constant dense<0xFF800000> : vector<2x8xf32>
    %30 = vector.multi_reduction <maximumf>, %29, %cst_14 [2] : vector<2x8x8xf32> to vector<2x8xf32>
    %31 = vector.shape_cast %30 : vector<2x8xf32> to vector<2x8x1xf32>
    %32 = vector.broadcast %31 : vector<2x8x1xf32> to vector<2x8x8xf32>
    %33 = arith.subf %29, %32 : vector<2x8x8xf32>
    %34 = math.exp %33 : vector<2x8x8xf32>
    %cst_15 = arith.constant dense<0.000000e+00> : vector<2x8xf32>
    %35 = vector.multi_reduction <add>, %34, %cst_15 [2] : vector<2x8x8xf32> to vector<2x8xf32>
    %36 = vector.shape_cast %35 : vector<2x8xf32> to vector<2x8x1xf32>
    %37 = tpu.reciprocal %36 {approx = true} : vector<2x8x1xf32> -> vector<2x8x1xf32>
    %38 = vector.broadcast %37 : vector<2x8x1xf32> to vector<2x8x8xf32>
    %39 = arith.mulf %34, %38 : vector<2x8x8xf32>
    %40 = arith.truncf %39 : vector<2x8x8xf32> to vector<2x8x8xbf16>
    "tpu.trace_start"() <{level = 10 : i32, message = "bqk,bkd->bqd"}> : () -> ()
    %cst_16 = arith.constant dense<0.000000e+00> : vector<2x8x16xf32>
    %41 = tpu.matmul %40, %26, %cst_16 {dimension_numbers = #tpu.dot_dimension_numbers<[2], [1], [1], [2], [0, 0, 0, 1, 1, 2], [0], [0]>} : vector<2x8x8xbf16>, vector<2x8x16xbf16>, vector<2x8x16xf32> -> vector<2x8x16xf32>
    "tpu.trace_stop"() : () -> ()
    %42 = vector.shape_cast %41 : vector<2x8x16xf32> to vector<16x16xf32>
    %43 = arith.truncf %42 : vector<16x16xf32> to vector<16x16xbf16>
    %c0_17 = arith.constant 0 : index
    %c0_18 = arith.constant 0 : index
    %c0_19 = arith.constant 0 : index
    %44 = vector.load %arg6[%c0_17, %c0_18, %c0_19] : memref<1x32x32xbf16, #tpu.memory_space<vmem>>, vector<1x16x32xbf16>
    %45 = vector.shape_cast %44 : vector<1x16x32xbf16> to vector<16x32xbf16>
    %cst_20 = arith.constant dense<0.000000e+00> : vector<16x32xf32>
    %46 = tpu.matmul %43, %45, %cst_20 {dimension_numbers = #tpu.dot_dimension_numbers<[1], [0], [0], [1], [0, 0, 1, 1], [], []>} : vector<16x16xbf16>, vector<16x32xbf16>, vector<16x32xf32> -> vector<16x32xf32>
    %47 = arith.addf %20, %46 : vector<16x32xf32>
    %48 = vector.extract_strided_slice %14 {offsets = [0, 0, 16], sizes = [2, 8, 16], strides = [1, 1, 1]} : vector<2x8x32xf32> to vector<2x8x16xf32>
    %49 = arith.truncf %48 : vector<2x8x16xf32> to vector<2x8x16xbf16>
    %50 = vector.extract_strided_slice %16 {offsets = [0, 0, 16], sizes = [2, 8, 16], strides = [1, 1, 1]} : vector<2x8x32xf32> to vector<2x8x16xf32>
    %51 = arith.truncf %50 : vector<2x8x16xf32> to vector<2x8x16xbf16>
    %52 = vector.extract_strided_slice %18 {offsets = [0, 0, 16], sizes = [2, 8, 16], strides = [1, 1, 1]} : vector<2x8x32xf32> to vector<2x8x16xf32>
    %53 = arith.truncf %52 : vector<2x8x16xf32> to vector<2x8x16xbf16>
    "tpu.trace_start"() <{level = 10 : i32, message = "bqd,bkd->bqk"}> : () -> ()
    %cst_21 = arith.constant dense<0.000000e+00> : vector<2x8x8xf32>
    %54 = tpu.matmul %49, %51, %cst_21 {dimension_numbers = #tpu.dot_dimension_numbers<[2], [2], [1], [1], [0, 0, 0, 1, 1, 1], [0], [0]>} : vector<2x8x16xbf16>, vector<2x8x16xbf16>, vector<2x8x8xf32> -> vector<2x8x8xf32>
    "tpu.trace_stop"() : () -> ()
    %55 = vector.broadcast %19 : vector<2x1x8xf32> to vector<2x8x8xf32>
    %56 = arith.addf %54, %55 : vector<2x8x8xf32>
    %cst_22 = arith.constant dense<0xFF800000> : vector<2x8xf32>
    %57 = vector.multi_reduction <maximumf>, %56, %cst_22 [2] : vector<2x8x8xf32> to vector<2x8xf32>
    %58 = vector.shape_cast %57 : vector<2x8xf32> to vector<2x8x1xf32>
    %59 = vector.broadcast %58 : vector<2x8x1xf32> to vector<2x8x8xf32>
    %60 = arith.subf %56, %59 : vector<2x8x8xf32>
    %61 = math.exp %60 : vector<2x8x8xf32>
    %cst_23 = arith.constant dense<0.000000e+00> : vector<2x8xf32>
    %62 = vector.multi_reduction <add>, %61, %cst_23 [2] : vector<2x8x8xf32> to vector<2x8xf32>
    %63 = vector.shape_cast %62 : vector<2x8xf32> to vector<2x8x1xf32>
    %64 = tpu.reciprocal %63 {approx = true} : vector<2x8x1xf32> -> vector<2x8x1xf32>
    %65 = vector.broadcast %64 : vector<2x8x1xf32> to vector<2x8x8xf32>
    %66 = arith.mulf %61, %65 : vector<2x8x8xf32>
    %67 = arith.truncf %66 : vector<2x8x8xf32> to vector<2x8x8xbf16>
    "tpu.trace_start"() <{level = 10 : i32, message = "bqk,bkd->bqd"}> : () -> ()
    %cst_24 = arith.constant dense<0.000000e+00> : vector<2x8x16xf32>
    %68 = tpu.matmul %67, %53, %cst_24 {dimension_numbers = #tpu.dot_dimension_numbers<[2], [1], [1], [2], [0, 0, 0, 1, 1, 2], [0], [0]>} : vector<2x8x8xbf16>, vector<2x8x16xbf16>, vector<2x8x16xf32> -> vector<2x8x16xf32>
    "tpu.trace_stop"() : () -> ()
    %69 = vector.shape_cast %68 : vector<2x8x16xf32> to vector<16x16xf32>
    %70 = arith.truncf %69 : vector<16x16xf32> to vector<16x16xbf16>
    %c0_25 = arith.constant 0 : index
    %c16 = arith.constant 16 : index
    %c0_26 = arith.constant 0 : index
    %71 = vector.load %arg6[%c0_25, %c16, %c0_26] : memref<1x32x32xbf16, #tpu.memory_space<vmem>>, vector<1x16x32xbf16>
    %72 = vector.shape_cast %71 : vector<1x16x32xbf16> to vector<16x32xbf16>
    %cst_27 = arith.constant dense<0.000000e+00> : vector<16x32xf32>
    %73 = tpu.matmul %70, %72, %cst_27 {dimension_numbers = #tpu.dot_dimension_numbers<[1], [0], [0], [1], [0, 0, 1, 1], [], []>} : vector<16x16xbf16>, vector<16x32xbf16>, vector<16x32xf32> -> vector<16x32xf32>
    %74 = arith.addf %47, %73 : vector<16x32xf32>
    %c0_28 = arith.constant 0 : index
    %c0_29 = arith.constant 0 : index
    %c0_30 = arith.constant 0 : index
    %75 = vector.load %arg7[%c0_28, %c0_29, %c0_30] : memref<1x1x32xf32, #tpu.memory_space<vmem>>, vector<1x1x32xf32>
    %76 = vector.shape_cast %75 : vector<1x1x32xf32> to vector<1x32xf32>
    %77 = vector.broadcast %76 : vector<1x32xf32> to vector<16x32xf32>
    %78 = arith.addf %74, %77 : vector<16x32xf32>
    %79 = arith.addf %4, %78 : vector<16x32xf32>
    %c0_31 = arith.constant 0 : index
    %c0_32 = arith.constant 0 : index
    %c0_33 = arith.constant 0 : index
    %80 = vector.load %arg8[%c0_31, %c0_32, %c0_33] : memref<1x1x32xf32, #tpu.memory_space<vmem>>, vector<1x1x32xf32>
    %81 = vector.shape_cast %80 : vector<1x1x32xf32> to vector<1x32xf32>
    %c0_34 = arith.constant 0 : index
    %c0_35 = arith.constant 0 : index
    %c0_36 = arith.constant 0 : index
    %82 = vector.load %arg9[%c0_34, %c0_35, %c0_36] : memref<1x1x32xf32, #tpu.memory_space<vmem>>, vector<1x1x32xf32>
    %83 = vector.shape_cast %82 : vector<1x1x32xf32> to vector<1x32xf32>
    %cst_37 = arith.constant dense<0.000000e+00> : vector<16xf32>
    %84 = vector.multi_reduction <add>, %79, %cst_37 [1] : vector<16x32xf32> to vector<16xf32>
    %85 = vector.shape_cast %84 : vector<16xf32> to vector<16x1xf32>
    %cst_38 = arith.constant 3.200000e+01 : f32
    %86 = vector.broadcast %cst_38 : f32 to vector<16x1xf32>
    %87 = arith.divf %85, %86 : vector<16x1xf32>
    %88 = vector.broadcast %87 : vector<16x1xf32> to vector<16x32xf32>
    %89 = arith.subf %79, %88 : vector<16x32xf32>
    %90 = arith.mulf %89, %89 : vector<16x32xf32>
    %cst_39 = arith.constant dense<0.000000e+00> : vector<16xf32>
    %91 = vector.multi_reduction <add>, %90, %cst_39 [1] : vector<16x32xf32> to vector<16xf32>
    %92 = vector.shape_cast %91 : vector<16xf32> to vector<16x1xf32>
    %cst_40 = arith.constant 3.200000e+01 : f32
    %93 = vector.broadcast %cst_40 : f32 to vector<16x1xf32>
    %94 = arith.divf %92, %93 : vector<16x1xf32>
    %95 = vector.broadcast %87 : vector<16x1xf32> to vector<16x32xf32>
    %96 = arith.subf %79, %95 : vector<16x32xf32>
    %cst_41 = arith.constant 9.99999996E-13 : f32
    %97 = vector.broadcast %cst_41 : f32 to vector<16x1xf32>
    %98 = arith.addf %94, %97 : vector<16x1xf32>
    %99 = math.rsqrt %98 : vector<16x1xf32>
    %100 = vector.broadcast %99 : vector<16x1xf32> to vector<16x32xf32>
    %101 = arith.mulf %96, %100 : vector<16x32xf32>
    %102 = vector.broadcast %81 : vector<1x32xf32> to vector<16x32xf32>
    %103 = arith.mulf %101, %102 : vector<16x32xf32>
    %104 = vector.broadcast %83 : vector<1x32xf32> to vector<16x32xf32>
    %105 = arith.addf %103, %104 : vector<16x32xf32>
    %106 = arith.truncf %105 : vector<16x32xf32> to vector<16x32xbf16>
    %cst_42 = arith.constant 0.000000e+00 : f32
    %107 = vector.broadcast %cst_42 : f32 to vector<16x32xf32>
    %c0_43 = arith.constant 0 : index
    %c0_44 = arith.constant 0 : index
    %c0_45 = arith.constant 0 : index
    %108 = vector.load %arg10[%c0_43, %c0_44, %c0_45] : memref<1x32x64xbf16, #tpu.memory_space<vmem>>, vector<1x32x64xbf16>
    %109 = vector.shape_cast %108 : vector<1x32x64xbf16> to vector<32x64xbf16>
    %c0_46 = arith.constant 0 : index
    %c0_47 = arith.constant 0 : index
    %c0_48 = arith.constant 0 : index
    %110 = vector.load %arg11[%c0_46, %c0_47, %c0_48] : memref<1x1x64xf32, #tpu.memory_space<vmem>>, vector<1x1x64xf32>
    %111 = vector.shape_cast %110 : vector<1x1x64xf32> to vector<1x64xf32>
    %c0_49 = arith.constant 0 : index
    %c0_50 = arith.constant 0 : index
    %c0_51 = arith.constant 0 : index
    %112 = vector.load %arg12[%c0_49, %c0_50, %c0_51] : memref<1x64x32xbf16, #tpu.memory_space<vmem>>, vector<1x64x32xbf16>
    %113 = vector.shape_cast %112 : vector<1x64x32xbf16> to vector<64x32xbf16>
    %cst_52 = arith.constant dense<0.000000e+00> : vector<16x64xf32>
    %114 = tpu.matmul %106, %109, %cst_52 {dimension_numbers = #tpu.dot_dimension_numbers<[1], [0], [0], [1], [0, 0, 1, 1], [], []>} : vector<16x32xbf16>, vector<32x64xbf16>, vector<16x64xf32> -> vector<16x64xf32>
    %115 = vector.broadcast %111 : vector<1x64xf32> to vector<16x64xf32>
    %116 = arith.addf %114, %115 : vector<16x64xf32>
    %cst_53 = arith.constant 5.000000e-01 : f32
    %117 = vector.broadcast %cst_53 : f32 to vector<16x64xf32>
    %118 = arith.mulf %117, %116 : vector<16x64xf32>
    %cst_54 = arith.constant 4.471500e-02 : f32
    %119 = vector.broadcast %cst_54 : f32 to vector<16x64xf32>
    %120 = arith.mulf %119, %116 : vector<16x64xf32>
    %121 = arith.mulf %120, %116 : vector<16x64xf32>
    %122 = arith.mulf %121, %116 : vector<16x64xf32>
    %123 = arith.addf %116, %122 : vector<16x64xf32>
    %cst_55 = arith.constant 0.797884583 : f32
    %124 = vector.broadcast %cst_55 : f32 to vector<16x64xf32>
    %125 = arith.mulf %124, %123 : vector<16x64xf32>
    %126 = math.tanh %125 : vector<16x64xf32>
    %cst_56 = arith.constant 1.000000e+00 : f32
    %127 = vector.broadcast %cst_56 : f32 to vector<16x64xf32>
    %128 = arith.addf %127, %126 : vector<16x64xf32>
    %129 = arith.mulf %118, %128 : vector<16x64xf32>
    %130 = arith.truncf %129 : vector<16x64xf32> to vector<16x64xbf16>
    %cst_57 = arith.constant dense<0.000000e+00> : vector<16x32xf32>
    %131 = tpu.matmul %130, %113, %cst_57 {dimension_numbers = #tpu.dot_dimension_numbers<[1], [0], [0], [1], [0, 0, 1, 1], [], []>} : vector<16x64xbf16>, vector<64x32xbf16>, vector<16x32xf32> -> vector<16x32xf32>
    %132 = arith.addf %107, %131 : vector<16x32xf32>
    %133 = arith.addf %105, %132 : vector<16x32xf32>
    %c0_58 = arith.constant 0 : index
    %c0_59 = arith.constant 0 : index
    %c0_60 = arith.constant 0 : index
    %134 = vector.load %arg13[%c0_58, %c0_59, %c0_60] : memref<1x1x32xf32, #tpu.memory_space<vmem>>, vector<1x1x32xf32>
    %135 = vector.shape_cast %134 : vector<1x1x32xf32> to vector<1x32xf32>
    %136 = vector.broadcast %135 : vector<1x32xf32> to vector<16x32xf32>
    %137 = arith.addf %133, %136 : vector<16x32xf32>
    %c0_61 = arith.constant 0 : index
    %c0_62 = arith.constant 0 : index
    %c0_63 = arith.constant 0 : index
    %138 = vector.load %arg14[%c0_61, %c0_62, %c0_63] : memref<1x1x32xf32, #tpu.memory_space<vmem>>, vector<1x1x32xf32>
    %139 = vector.shape_cast %138 : vector<1x1x32xf32> to vector<1x32xf32>
    %c0_64 = arith.constant 0 : index
    %c0_65 = arith.constant 0 : index
    %c0_66 = arith.constant 0 : index
    %140 = vector.load %arg15[%c0_64, %c0_65, %c0_66] : memref<1x1x32xf32, #tpu.memory_space<vmem>>, vector<1x1x32xf32>
    %141 = vector.shape_cast %140 : vector<1x1x32xf32> to vector<1x32xf32>
    %cst_67 = arith.constant dense<0.000000e+00> : vector<16xf32>
    %142 = vector.multi_reduction <add>, %137, %cst_67 [1] : vector<16x32xf32> to vector<16xf32>
    %143 = vector.shape_cast %142 : vector<16xf32> to vector<16x1xf32>
    %cst_68 = arith.constant 3.200000e+01 : f32
    %144 = vector.broadcast %cst_68 : f32 to vector<16x1xf32>
    %145 = arith.divf %143, %144 : vector<16x1xf32>
    %146 = vector.broadcast %145 : vector<16x1xf32> to vector<16x32xf32>
    %147 = arith.subf %137, %146 : vector<16x32xf32>
    %148 = arith.mulf %147, %147 : vector<16x32xf32>
    %cst_69 = arith.constant dense<0.000000e+00> : vector<16xf32>
    %149 = vector.multi_reduction <add>, %148, %cst_69 [1] : vector<16x32xf32> to vector<16xf32>
    %150 = vector.shape_cast %149 : vector<16xf32> to vector<16x1xf32>
    %cst_70 = arith.constant 3.200000e+01 : f32
    %151 = vector.broadcast %cst_70 : f32 to vector<16x1xf32>
    %152 = arith.divf %150, %151 : vector<16x1xf32>
    %153 = vector.broadcast %145 : vector<16x1xf32> to vector<16x32xf32>
    %154 = arith.subf %137, %153 : vector<16x32xf32>
    %cst_71 = arith.constant 9.99999996E-13 : f32
    %155 = vector.broadcast %cst_71 : f32 to vector<16x1xf32>
    %156 = arith.addf %152, %155 : vector<16x1xf32>
    %157 = math.rsqrt %156 : vector<16x1xf32>
    %158 = vector.broadcast %157 : vector<16x1xf32> to vector<16x32xf32>
    %159 = arith.mulf %154, %158 : vector<16x32xf32>
    %160 = vector.broadcast %139 : vector<1x32xf32> to vector<16x32xf32>
    %161 = arith.mulf %159, %160 : vector<16x32xf32>
    %162 = vector.broadcast %141 : vector<1x32xf32> to vector<16x32xf32>
    %163 = arith.addf %161, %162 : vector<16x32xf32>
    %164 = vector.shape_cast %163 : vector<16x32xf32> to vector<2x8x32xf32>
    %c0_72 = arith.constant 0 : index
    %c0_73 = arith.constant 0 : index
    %c0_74 = arith.constant 0 : index
    %165 = vector.load %arg17[%c0_72, %c0_73, %c0_74] : memref<2x8x32xf32, #tpu.memory_space<vmem>>, vector<2x8x32xf32>
    tpu.vector_store %arg17[%c0_72, %c0_73, %c0_74], %164 {strides = array<i32>} : memref<2x8x32xf32, #tpu.memory_space<vmem>>, vector<2x8x32xf32>,
    %c1_i32 = arith.constant 1 : i32
    %166 = arith.cmpi eq, %arg1, %c1_i32 : i32
    %167 = arith.extui %166 : i1 to i32
    %c0_i32_75 = arith.constant 0 : i32
    %168 = arith.cmpi ne, %167, %c0_i32_75 : i32
    scf.if %168 {
      %169 = vector.shape_cast %163 : vector<16x32xf32> to vector<2x8x32xf32>
      %170 = vector.extract_strided_slice %169 {offsets = [0, 0, 0], sizes = [2, 1, 32], strides = [1, 1, 1]} : vector<2x8x32xf32> to vector<2x1x32xf32>
      %c0_76 = arith.constant 0 : index
      %c0_77 = arith.constant 0 : index
      %c0_78 = arith.constant 0 : index
      %171 = vector.load %arg16[%c0_76, %c0_77, %c0_78] : memref<2x1x32xf32, #tpu.memory_space<vmem>>, vector<2x1x32xf32>
      tpu.vector_store %arg16[%c0_76, %c0_77, %c0_78], %170 {strides = array<i32>} : memref<2x1x32xf32, #tpu.memory_space<vmem>>, vector<2x1x32xf32>,
    } else {
    }
    return
  }
  func.func @transform_0(%arg0: i32, %arg1: i32) -> (i32, i32, i32) {
    %c0_i32 = arith.constant 0 : i32
    %c0_i32_0 = arith.constant 0 : i32
    %c0_i32_1 = arith.constant 0 : i32
    return %arg0, %c0_i32, %c0_i32_0 : i32, i32, i32
  }
  func.func @transform_1(%arg0: i32, %arg1: i32) -> (i32, i32, i32) {
    %c0_i32 = arith.constant 0 : i32
    %c0_i32_0 = arith.constant 0 : i32
    %c0_i32_1 = arith.constant 0 : i32
    return %arg0, %c0_i32, %c0_i32_0 : i32, i32, i32
  }
  func.func @transform_2(%arg0: i32, %arg1: i32) -> (i32, i32, i32) {
    %c0_i32 = arith.constant 0 : i32
    %c0_i32_0 = arith.constant 0 : i32
    %c0_i32_1 = arith.constant 0 : i32
    return %arg1, %c0_i32, %c0_i32_0 : i32, i32, i32
  }
  func.func @transform_3(%arg0: i32, %arg1: i32) -> (i32, i32, i32) {
    %c0_i32 = arith.constant 0 : i32
    %c0_i32_0 = arith.constant 0 : i32
    %c0_i32_1 = arith.constant 0 : i32
    return %arg1, %c0_i32, %c0_i32_0 : i32, i32, i32
  }
  func.func @transform_4(%arg0: i32, %arg1: i32) -> (i32, i32, i32) {
    %c0_i32 = arith.constant 0 : i32
    %c0_i32_0 = arith.constant 0 : i32
    %c0_i32_1 = arith.constant 0 : i32
    return %arg1, %c0_i32, %c0_i32_0 : i32, i32, i32
  }
  func.func @transform_5(%arg0: i32, %arg1: i32) -> (i32, i32, i32) {
    %c0_i32 = arith.constant 0 : i32
    %c0_i32_0 = arith.constant 0 : i32
    %c0_i32_1 = arith.constant 0 : i32
    return %arg1, %c0_i32, %c0_i32_0 : i32, i32, i32
  }
  func.func @transform_6(%arg0: i32, %arg1: i32) -> (i32, i32, i32) {
    %c0_i32 = arith.constant 0 : i32
    %c0_i32_0 = arith.constant 0 : i32
    %c0_i32_1 = arith.constant 0 : i32
    return %arg1, %c0_i32, %c0_i32_0 : i32, i32, i32
  }
  func.func @transform_7(%arg0: i32, %arg1: i32) -> (i32, i32, i32) {
    %c0_i32 = arith.constant 0 : i32
    %c0_i32_0 = arith.constant 0 : i32
    %c0_i32_1 = arith.constant 0 : i32
    return %arg1, %c0_i32, %c0_i32_0 : i32, i32, i32
  }
  func.func @transform_8(%arg0: i32, %arg1: i32) -> (i32, i32, i32) {
    %c0_i32 = arith.constant 0 : i32
    %c0_i32_0 = arith.constant 0 : i32
    %c0_i32_1 = arith.constant 0 : i32
    return %arg1, %c0_i32, %c0_i32_0 : i32, i32, i32
  }
  func.func @transform_9(%arg0: i32, %arg1: i32) -> (i32, i32, i32) {
    %c0_i32 = arith.constant 0 : i32
    %c0_i32_0 = arith.constant 0 : i32
    %c0_i32_1 = arith.constant 0 : i32
    return %arg1, %c0_i32, %c0_i32_0 : i32, i32, i32
  }
  func.func @transform_10(%arg0: i32, %arg1: i32) -> (i32, i32, i32) {
    %c0_i32 = arith.constant 0 : i32
    %c0_i32_0 = arith.constant 0 : i32
    %c0_i32_1 = arith.constant 0 : i32
    return %arg1, %c0_i32, %c0_i32_0 : i32, i32, i32
  }
  func.func @transform_11(%arg0: i32, %arg1: i32) -> (i32, i32, i32) {
    %c0_i32 = arith.constant 0 : i32
    %c0_i32_0 = arith.constant 0 : i32
    %c0_i32_1 = arith.constant 0 : i32
    return %arg1, %c0_i32, %c0_i32_0 : i32, i32, i32
  }
  func.func @transform_12(%arg0: i32, %arg1: i32) -> (i32, i32, i32) {
    %c0_i32 = arith.constant 0 : i32
    %c0_i32_0 = arith.constant 0 : i32
    %c0_i32_1 = arith.constant 0 : i32
    return %arg1, %c0_i32, %c0_i32_0 : i32, i32, i32
  }
  func.func @transform_13(%arg0: i32, %arg1: i32) -> (i32, i32, i32) {
    %c0_i32 = arith.constant 0 : i32
    %c0_i32_0 = arith.constant 0 : i32
    %c0_i32_1 = arith.constant 0 : i32
    return %arg1, %c0_i32, %c0_i32_0 : i32, i32, i32
  }
  func.func @transform_14(%arg0: i32, %arg1: i32) -> (i32, i32, i32) {
    %c0_i32 = arith.constant 0 : i32
    %c0_i32_0 = arith.constant 0 : i32
    %c0_i32_1 = arith.constant 0 : i32
    return %arg0, %c0_i32, %c0_i32_0 : i32, i32, i32
  }
}

</mosaic_0001>

<llo_original>
// kernel: tpu_custom_call.1
$region0: #{tpu_custom_call.1}
  #allocation0 [shape = 'u32[]', space=smem, size = 0x4, offset = 0x4, fixed_abs, tag = 'smem constant byte address 0x4 - core index']
  #allocation1 [shape = 'u32[144,128]{1,0:T(1,128)}', space=vmem, size = 0x12000, scoped, tag = 'internal scratch']
  #allocation2 [shape = 'f32[2,8,32]{2,1,0:T(8,128)}', space=vmem, size = 0x2000, scoped, tag = 'scratch operand']
  %s0 = inlined_call_operand.hbm [shape: bf16[2,8,32], index: 0, kind: input, shape index: {}]
  %s1 = inlined_call_operand.vmem [shape: f32[2,1,8], index: 1, kind: input, shape index: {}]
  %s2 = inlined_call_operand.vmem [shape: bf16[2,32,96], index: 2, kind: input, shape index: {}]
  %s3 = inlined_call_operand.vmem [shape: f32[2,1,96], index: 3, kind: input, shape index: {}]
  %s4 = inlined_call_operand.vmem [shape: bf16[2,32,32], index: 4, kind: input, shape index: {}]
  %s5 = inlined_call_operand.hbm [shape: f32[2,1,32], index: 5, kind: input, shape index: {}]
  %s6 = inlined_call_operand.hbm [shape: f32[2,1,32], index: 6, kind: input, shape index: {}]
  %s7 = inlined_call_operand.hbm [shape: f32[2,1,32], index: 7, kind: input, shape index: {}]
  %s8 = inlined_call_operand.vmem [shape: bf16[2,32,64], index: 8, kind: input, shape index: {}]
  %s9 = inlined_call_operand.hbm [shape: f32[2,1,64], index: 9, kind: input, shape index: {}]
  %s10 = inlined_call_operand.vmem [shape: bf16[2,64,32], index: 10, kind: input, shape index: {}]
  %s11 = inlined_call_operand.vmem [shape: f32[2,1,32], index: 11, kind: input, shape index: {}]
  %s12 = inlined_call_operand.vmem [shape: f32[2,1,32], index: 12, kind: input, shape index: {}]
  %s13 = inlined_call_operand.vmem [shape: f32[2,1,32], index: 13, kind: input, shape index: {}]
  %s14 = inlined_call_operand.hbm [shape: f32[2,1,32], index: 14, kind: output, shape index: {}]
  %s15 = sld [smem:[#allocation0]]
  $region117: #{tpu_custom_call.1} parent=0
    _
  %s17 = ssub.s32 1, %s15
  %s18 = scalar_select 0, %s17, %s15
  $region1: #{tpu_custom_call.1} parent=0
    #allocation3 [shape = 'u8[4096]{0}', space=vmem, size = 0x1000, scoped, tag = 'input window, operand 0, single buffered']
    #allocation4 [shape = 's32[2]{0}', space=sflag, size = 0x8, scoped, tag = 'scoped memory for tpu_custom_call.1']
    #allocation5 [shape = 's32[2]{0}', space=sflag, size = 0x8, scoped, tag = 'scoped memory for tpu_custom_call.1']
    #allocation6 [shape = 'u8[1024]{0}', space=vmem, size = 0x400, scoped, tag = 'input window, operand 5']
    #allocation7 [shape = 's32[2]{0}', space=sflag, size = 0x8, scoped, tag = 'scoped memory for tpu_custom_call.1']
    #allocation8 [shape = 'u8[1024]{0}', space=vmem, size = 0x400, scoped, tag = 'input window, operand 6']
    #allocation9 [shape = 'u8[1024]{0}', space=vmem, size = 0x400, scoped, tag = 'input window, operand 7']
    #allocation10 [shape = 's32[2]{0}', space=sflag, size = 0x8, scoped, tag = 'scoped memory for tpu_custom_call.1']
    #allocation11 [shape = 'u8[1024]{0}', space=vmem, size = 0x400, scoped, tag = 'input window, operand 9']
    #allocation12 [shape = 'u8[1024]{0}', space=vmem, size = 0x400, scoped, tag = 'output window, operand 0, single buffered']
    %19 = vsyncpa [#allocation4], 0
    %20 = vsyncpa [#allocation7], 0
    %s21 = scalar_lea.sflag [#allocation7], 1
    %22 = vsyncpa %s21, 0
    %23 = vsyncpa [#allocation10], 0
    %s24 = scalar_lea.sflag [#allocation10], 1
    %25 = vsyncpa %s24, 0
    %26 = vsyncpa [#allocation5], 0
    loop: start=0, step=1, limit=4
    $region2: #{tpu_custom_call.1} parent=1 // loop_pre_header
      _
    $region3: #{tpu_custom_call.1} parent=1 // loop_header
      %s28 = sphi 0, %s32
      %p29 = scmp.ge.s32.totalorder %s28, 4
      %s35 = sphi 0, %s47
      %s36 = sphi 0, %s43
      %s37 = sphi 0, %s35
      %s38 = sphi 0, %s36
      %s39 = sphi 0, %s37
      %s40 = sphi 0, %s38
      %s50 = sphi 0, %s52
      %s53 = sphi 0, %s50
      %s54 = sphi 0, %s53
      %s70 = sphi 0, %s54
      %s76 = sphi 0, %s78
      %s79 = sphi 0, %s76
      %s80 = sphi 0, %s79
      %s96 = sphi 0, %s80
      %s102 = sphi 0, %s104
      %s105 = sphi 0, %s102
      %s106 = sphi 0, %s105
      %s122 = sphi 0, %s106
      %s128 = sphi 0, %s130
      %s131 = sphi 0, %s128
      %s132 = sphi 0, %s131
      %s148 = sphi 0, %s132
      %s154 = sphi 0, %s156
      %s157 = sphi 0, %s154
      %s158 = sphi 0, %s157
      %s174 = sphi 0, %s158
      %s180 = sphi 0, %s182
      %s183 = sphi 0, %s180
      %s184 = sphi 0, %s183
      %s200 = sphi 0, %s184
      %s206 = sphi 0, %s208
      %s209 = sphi 0, %s206
      %s210 = sphi 0, %s209
      %s226 = sphi 0, %s210
      %s232 = sphi 0, %s234
      %s235 = sphi 0, %s232
      %s236 = sphi 0, %s235
      %s252 = sphi 0, %s236
      %s258 = sphi 0, %s260
      %s261 = sphi 0, %s258
      %s262 = sphi 0, %s261
      %s278 = sphi 0, %s262
      %s284 = sphi 0, %s286
      %s287 = sphi 0, %s284
      %s288 = sphi 0, %s287
      %s304 = sphi 0, %s288
      %s310 = sphi 0, %s312
      %s313 = sphi 0, %s310
      %s314 = sphi 0, %s313
      %s330 = sphi 0, %s314
      %s336 = sphi 0, %s338
      %s339 = sphi 0, %s336
      %s340 = sphi 0, %s339
      %s356 = sphi 0, %s340
      %s362 = sphi 0, %s364
      %s365 = sphi 0, %s362
      %s366 = sphi 0, %s365
      %s382 = sphi 0, %s366
      %s388 = sphi 0, %s390
      %s391 = sphi 0, %s388
      %s392 = sphi 0, %s391
      %s408 = sphi 0, %s392
      %s414 = sphi 0, %s416
      %s417 = sphi 0, %s414
      %s418 = sphi 0, %s417
      %s434 = sphi 0, %s418
    $region4: #{tpu_custom_call.1} parent=1 // loop_header_branch
      %31 = sbr.rel (%p29) target = $region8
    $region5: #{tpu_custom_call.1} parent=1 // loop_body
      %s33 = ssub.s32 %s28, 1
      %s34 = ssub.s32 %s28, 2
      %s41 = sadd.s32 1, %s36
      %p42 = scmp.ge.s32.totalorder %s41, 2
      %s43 = scalar_select %p42, 0, %s41
      %s44 = sadd.s32 1, %s35
      %s45 = scalar_select %p42, %s44, %s35
      %p46 = scmp.ge.s32.totalorder %s45, 1
      %s47 = scalar_select %p46, 0, %s45
      %s48 = ssub.s32 %s35, %s47
      %p49 = scmp.eq.s32.totalorder %s48, 0
      %s51 = sadd.s32 %s50, 1
      %s52 = scalar_select %p49, %s50, %s51
      %p55 = pneg %p49
      %p56 = scmp.eq.s32.totalorder %s28, 1
      %p57 = por %p55, %p56
      %p58 = scmp.ne.s32.totalorder %s50, %s53
      %p59 = scmp.eq.s32.totalorder %s28, 0
      %p60 = por %p58, %p59
      %p61 = scmp.ne.s32.totalorder %s50, %s53
      %p62 = scmp.eq.s32.totalorder %s33, 1
      %p63 = por %p61, %p62
      %p64 = scmp.ne.s32.totalorder %s53, %s54
      %p65 = scmp.eq.s32.totalorder %s33, 0
      %p66 = por %p64, %p65
      %p67 = scmp.ne.s32.totalorder %s53, %s54
      %p68 = scmp.eq.s32.totalorder %s34, 1
      %p69 = por %p67, %p68
      %p71 = scmp.ne.s32.totalorder %s54, %s70
      %p72 = scmp.eq.s32.totalorder %s34, 0
      %p73 = por %p71, %p72
      %s74 = ssub.s32 %s35, %s47
      %p75 = scmp.eq.s32.totalorder %s74, 0
      %s77 = sadd.s32 %s76, 1
      %s78 = scalar_select %p75, %s76, %s77
      %p81 = pneg %p75
      %p82 = scmp.eq.s32.totalorder %s28, 1
      %p83 = por %p81, %p82
      %p84 = scmp.ne.s32.totalorder %s76, %s79
      %p85 = scmp.eq.s32.totalorder %s28, 0
      %p86 = por %p84, %p85
      %p87 = scmp.ne.s32.totalorder %s76, %s79
      %p88 = scmp.eq.s32.totalorder %s33, 1
      %p89 = por %p87, %p88
      %p90 = scmp.ne.s32.totalorder %s79, %s80
      %p91 = scmp.eq.s32.totalorder %s33, 0
      %p92 = por %p90, %p91
      %p93 = scmp.ne.s32.totalorder %s79, %s80
      %p94 = scmp.eq.s32.totalorder %s34, 1
      %p95 = por %p93, %p94
      %p97 = scmp.ne.s32.totalorder %s80, %s96
      %p98 = scmp.eq.s32.totalorder %s34, 0
      %p99 = por %p97, %p98
      %s100 = ssub.s32 %s36, %s43
      %p101 = scmp.eq.s32.totalorder %s100, 0
      %s103 = sadd.s32 %s102, 1
      %s104 = scalar_select %p101, %s102, %s103
      %p107 = pneg %p101
      %p108 = scmp.eq.s32.totalorder %s28, 1
      %p109 = por %p107, %p108
      %p110 = scmp.ne.s32.totalorder %s102, %s105
      %p111 = scmp.eq.s32.totalorder %s28, 0
      %p112 = por %p110, %p111
      %p113 = scmp.ne.s32.totalorder %s102, %s105
      %p114 = scmp.eq.s32.totalorder %s33, 1
      %p115 = por %p113, %p114
      %p116 = scmp.ne.s32.totalorder %s105, %s106
      %p117 = scmp.eq.s32.totalorder %s33, 0
      %p118 = por %p116, %p117
      %p119 = scmp.ne.s32.totalorder %s105, %s106
      %p120 = scmp.eq.s32.totalorder %s34, 1
      %p121 = por %p119, %p120
      %p123 = scmp.ne.s32.totalorder %s106, %s122
      %p124 = scmp.eq.s32.totalorder %s34, 0
      %p125 = por %p123, %p124
      %s126 = ssub.s32 %s36, %s43
      %p127 = scmp.eq.s32.totalorder %s126, 0
      %s129 = sadd.s32 %s128, 1
      %s130 = scalar_select %p127, %s128, %s129
      %p133 = pneg %p127
      %p134 = scmp.eq.s32.totalorder %s28, 1
      %p135 = por %p133, %p134
      %p136 = scmp.ne.s32.totalorder %s128, %s131
      %p137 = scmp.eq.s32.totalorder %s28, 0
      %p138 = por %p136, %p137
      %p139 = scmp.ne.s32.totalorder %s128, %s131
      %p140 = scmp.eq.s32.totalorder %s33, 1
      %p141 = por %p139, %p140
      %p142 = scmp.ne.s32.totalorder %s131, %s132
      %p143 = scmp.eq.s32.totalorder %s33, 0
      %p144 = por %p142, %p143
      %p145 = scmp.ne.s32.totalorder %s131, %s132
      %p146 = scmp.eq.s32.totalorder %s34, 1
      %p147 = por %p145, %p146
      %p149 = scmp.ne.s32.totalorder %s132, %s148
      %p150 = scmp.eq.s32.totalorder %s34, 0
      %p151 = por %p149, %p150
      %s152 = ssub.s32 %s36, %s43
      %p153 = scmp.eq.s32.totalorder %s152, 0
      %s155 = sadd.s32 %s154, 1
      %s156 = scalar_select %p153, %s154, %s155
      %p159 = pneg %p153
      %p160 = scmp.eq.s32.totalorder %s28, 1
      %p161 = por %p159, %p160
      %p162 = scmp.ne.s32.totalorder %s154, %s157
      %p163 = scmp.eq.s32.totalorder %s28, 0
      %p164 = por %p162, %p163
      %p165 = scmp.ne.s32.totalorder %s154, %s157
      %p166 = scmp.eq.s32.totalorder %s33, 1
      %p167 = por %p165, %p166
      %p168 = scmp.ne.s32.totalorder %s157, %s158
      %p169 = scmp.eq.s32.totalorder %s33, 0
      %p170 = por %p168, %p169
      %p171 = scmp.ne.s32.totalorder %s157, %s158
      %p172 = scmp.eq.s32.totalorder %s34, 1
      %p173 = por %p171, %p172
      %p175 = scmp.ne.s32.totalorder %s158, %s174
      %p176 = scmp.eq.s32.totalorder %s34, 0
      %p177 = por %p175, %p176
      %s178 = ssub.s32 %s36, %s43
      %p179 = scmp.eq.s32.totalorder %s178, 0
      %s181 = sadd.s32 %s180, 1
      %s182 = scalar_select %p179, %s180, %s181
      %p185 = pneg %p179
      %p186 = scmp.eq.s32.totalorder %s28, 1
      %p187 = por %p185, %p186
      %p188 = scmp.ne.s32.totalorder %s180, %s183
      %p189 = scmp.eq.s32.totalorder %s28, 0
      %p190 = por %p188, %p189
      %p191 = scmp.ne.s32.totalorder %s180, %s183
      %p192 = scmp.eq.s32.totalorder %s33, 1
      %p193 = por %p191, %p192
      %p194 = scmp.ne.s32.totalorder %s183, %s184
      %p195 = scmp.eq.s32.totalorder %s33, 0
      %p196 = por %p194, %p195
      %p197 = scmp.ne.s32.totalorder %s183, %s184
      %p198 = scmp.eq.s32.totalorder %s34, 1
      %p199 = por %p197, %p198
      %p201 = scmp.ne.s32.totalorder %s184, %s200
      %p202 = scmp.eq.s32.totalorder %s34, 0
      %p203 = por %p201, %p202
      %s204 = ssub.s32 %s36, %s43
      %p205 = scmp.eq.s32.totalorder %s204, 0
      %s207 = sadd.s32 %s206, 1
      %s208 = scalar_select %p205, %s206, %s207
      %p211 = pneg %p205
      %p212 = scmp.eq.s32.totalorder %s28, 1
      %p213 = por %p211, %p212
      %p214 = scmp.ne.s32.totalorder %s206, %s209
      %p215 = scmp.eq.s32.totalorder %s28, 0
      %p216 = por %p214, %p215
      %p217 = scmp.ne.s32.totalorder %s206, %s209
      %p218 = scmp.eq.s32.totalorder %s33, 1
      %p219 = por %p217, %p218
      %p220 = scmp.ne.s32.totalorder %s209, %s210
      %p221 = scmp.eq.s32.totalorder %s33, 0
      %p222 = por %p220, %p221
      %p223 = scmp.ne.s32.totalorder %s209, %s210
      %p224 = scmp.eq.s32.totalorder %s34, 1
      %p225 = por %p223, %p224
      %p227 = scmp.ne.s32.totalorder %s210, %s226
      %p228 = scmp.eq.s32.totalorder %s34, 0
      %p229 = por %p227, %p228
      %s230 = ssub.s32 %s36, %s43
      %p231 = scmp.eq.s32.totalorder %s230, 0
      %s233 = sadd.s32 %s232, 1
      %s234 = scalar_select %p231, %s232, %s233
      %p237 = pneg %p231
      %p238 = scmp.eq.s32.totalorder %s28, 1
      %p239 = por %p237, %p238
      %p240 = scmp.ne.s32.totalorder %s232, %s235
      %p241 = scmp.eq.s32.totalorder %s28, 0
      %p242 = por %p240, %p241
      %p243 = scmp.ne.s32.totalorder %s232, %s235
      %p244 = scmp.eq.s32.totalorder %s33, 1
      %p245 = por %p243, %p244
      %p246 = scmp.ne.s32.totalorder %s235, %s236
      %p247 = scmp.eq.s32.totalorder %s33, 0
      %p248 = por %p246, %p247
      %p249 = scmp.ne.s32.totalorder %s235, %s236
      %p250 = scmp.eq.s32.totalorder %s34, 1
      %p251 = por %p249, %p250
      %p253 = scmp.ne.s32.totalorder %s236, %s252
      %p254 = scmp.eq.s32.totalorder %s34, 0
      %p255 = por %p253, %p254
      %s256 = ssub.s32 %s36, %s43
      %p257 = scmp.eq.s32.totalorder %s256, 0
      %s259 = sadd.s32 %s258, 1
      %s260 = scalar_select %p257, %s258, %s259
      %p263 = pneg %p257
      %p264 = scmp.eq.s32.totalorder %s28, 1
      %p265 = por %p263, %p264
      %p266 = scmp.ne.s32.totalorder %s258, %s261
      %p267 = scmp.eq.s32.totalorder %s28, 0
      %p268 = por %p266, %p267
      %p269 = scmp.ne.s32.totalorder %s258, %s261
      %p270 = scmp.eq.s32.totalorder %s33, 1
      %p271 = por %p269, %p270
      %p272 = scmp.ne.s32.totalorder %s261, %s262
      %p273 = scmp.eq.s32.totalorder %s33, 0
      %p274 = por %p272, %p273
      %p275 = scmp.ne.s32.totalorder %s261, %s262
      %p276 = scmp.eq.s32.totalorder %s34, 1
      %p277 = por %p275, %p276
      %p279 = scmp.ne.s32.totalorder %s262, %s278
      %p280 = scmp.eq.s32.totalorder %s34, 0
      %p281 = por %p279, %p280
      %s282 = ssub.s32 %s36, %s43
      %p283 = scmp.eq.s32.totalorder %s282, 0
      %s285 = sadd.s32 %s284, 1
      %s286 = scalar_select %p283, %s284, %s285
      %p289 = pneg %p283
      %p290 = scmp.eq.s32.totalorder %s28, 1
      %p291 = por %p289, %p290
      %p292 = scmp.ne.s32.totalorder %s284, %s287
      %p293 = scmp.eq.s32.totalorder %s28, 0
      %p294 = por %p292, %p293
      %p295 = scmp.ne.s32.totalorder %s284, %s287
      %p296 = scmp.eq.s32.totalorder %s33, 1
      %p297 = por %p295, %p296
      %p298 = scmp.ne.s32.totalorder %s287, %s288
      %p299 = scmp.eq.s32.totalorder %s33, 0
      %p300 = por %p298, %p299
      %p301 = scmp.ne.s32.totalorder %s287, %s288
      %p302 = scmp.eq.s32.totalorder %s34, 1
      %p303 = por %p301, %p302
      %p305 = scmp.ne.s32.totalorder %s288, %s304
      %p306 = scmp.eq.s32.totalorder %s34, 0
      %p307 = por %p305, %p306
      %s308 = ssub.s32 %s36, %s43
      %p309 = scmp.eq.s32.totalorder %s308, 0
      %s311 = sadd.s32 %s310, 1
      %s312 = scalar_select %p309, %s310, %s311
      %p315 = pneg %p309
      %p316 = scmp.eq.s32.totalorder %s28, 1
      %p317 = por %p315, %p316
      %p318 = scmp.ne.s32.totalorder %s310, %s313
      %p319 = scmp.eq.s32.totalorder %s28, 0
      %p320 = por %p318, %p319
      %p321 = scmp.ne.s32.totalorder %s310, %s313
      %p322 = scmp.eq.s32.totalorder %s33, 1
      %p323 = por %p321, %p322
      %p324 = scmp.ne.s32.totalorder %s313, %s314
      %p325 = scmp.eq.s32.totalorder %s33, 0
      %p326 = por %p324, %p325
      %p327 = scmp.ne.s32.totalorder %s313, %s314
      %p328 = scmp.eq.s32.totalorder %s34, 1
      %p329 = por %p327, %p328
      %p331 = scmp.ne.s32.totalorder %s314, %s330
      %p332 = scmp.eq.s32.totalorder %s34, 0
      %p333 = por %p331, %p332
      %s334 = ssub.s32 %s36, %s43
      %p335 = scmp.eq.s32.totalorder %s334, 0
      %s337 = sadd.s32 %s336, 1
      %s338 = scalar_select %p335, %s336, %s337
      %p341 = pneg %p335
      %p342 = scmp.eq.s32.totalorder %s28, 1
      %p343 = por %p341, %p342
      %p344 = scmp.ne.s32.totalorder %s336, %s339
      %p345 = scmp.eq.s32.totalorder %s28, 0
      %p346 = por %p344, %p345
      %p347 = scmp.ne.s32.totalorder %s336, %s339
      %p348 = scmp.eq.s32.totalorder %s33, 1
      %p349 = por %p347, %p348
      %p350 = scmp.ne.s32.totalorder %s339, %s340
      %p351 = scmp.eq.s32.totalorder %s33, 0
      %p352 = por %p350, %p351
      %p353 = scmp.ne.s32.totalorder %s339, %s340
      %p354 = scmp.eq.s32.totalorder %s34, 1
      %p355 = por %p353, %p354
      %p357 = scmp.ne.s32.totalorder %s340, %s356
      %p358 = scmp.eq.s32.totalorder %s34, 0
      %p359 = por %p357, %p358
      %s360 = ssub.s32 %s36, %s43
      %p361 = scmp.eq.s32.totalorder %s360, 0
      %s363 = sadd.s32 %s362, 1
      %s364 = scalar_select %p361, %s362, %s363
      %p367 = pneg %p361
      %p368 = scmp.eq.s32.totalorder %s28, 1
      %p369 = por %p367, %p368
      %p370 = scmp.ne.s32.totalorder %s362, %s365
      %p371 = scmp.eq.s32.totalorder %s28, 0
      %p372 = por %p370, %p371
      %p373 = scmp.ne.s32.totalorder %s362, %s365
      %p374 = scmp.eq.s32.totalorder %s33, 1
      %p375 = por %p373, %p374
      %p376 = scmp.ne.s32.totalorder %s365, %s366
      %p377 = scmp.eq.s32.totalorder %s33, 0
      %p378 = por %p376, %p377
      %p379 = scmp.ne.s32.totalorder %s365, %s366
      %p380 = scmp.eq.s32.totalorder %s34, 1
      %p381 = por %p379, %p380
      %p383 = scmp.ne.s32.totalorder %s366, %s382
      %p384 = scmp.eq.s32.totalorder %s34, 0
      %p385 = por %p383, %p384
      %s386 = ssub.s32 %s36, %s43
      %p387 = scmp.eq.s32.totalorder %s386, 0
      %s389 = sadd.s32 %s388, 1
      %s390 = scalar_select %p387, %s388, %s389
      %p393 = pneg %p387
      %p394 = scmp.eq.s32.totalorder %s28, 1
      %p395 = por %p393, %p394
      %p396 = scmp.ne.s32.totalorder %s388, %s391
      %p397 = scmp.eq.s32.totalorder %s28, 0
      %p398 = por %p396, %p397
      %p399 = scmp.ne.s32.totalorder %s388, %s391
      %p400 = scmp.eq.s32.totalorder %s33, 1
      %p401 = por %p399, %p400
      %p402 = scmp.ne.s32.totalorder %s391, %s392
      %p403 = scmp.eq.s32.totalorder %s33, 0
      %p404 = por %p402, %p403
      %p405 = scmp.ne.s32.totalorder %s391, %s392
      %p406 = scmp.eq.s32.totalorder %s34, 1
      %p407 = por %p405, %p406
      %p409 = scmp.ne.s32.totalorder %s392, %s408
      %p410 = scmp.eq.s32.totalorder %s34, 0
      %p411 = por %p409, %p410
      %s412 = ssub.s32 %s35, %s47
      %p413 = scmp.eq.s32.totalorder %s412, 0
      %s415 = sadd.s32 %s414, 1
      %s416 = scalar_select %p413, %s414, %s415
      %p419 = pneg %p413
      %p420 = scmp.eq.s32.totalorder %s28, 1
      %p421 = por %p419, %p420
      %p422 = scmp.ne.s32.totalorder %s414, %s417
      %p423 = scmp.eq.s32.totalorder %s28, 0
      %p424 = por %p422, %p423
      %p425 = scmp.ne.s32.totalorder %s414, %s417
      %p426 = scmp.eq.s32.totalorder %s33, 1
      %p427 = por %p425, %p426
      %p428 = scmp.ne.s32.totalorder %s417, %s418
      %p429 = scmp.eq.s32.totalorder %s33, 0
      %p430 = por %p428, %p429
      %p431 = scmp.ne.s32.totalorder %s417, %s418
      %p432 = scmp.eq.s32.totalorder %s34, 1
      %p433 = por %p431, %p432
      %p435 = scmp.ne.s32.totalorder %s418, %s434
      %p436 = scmp.eq.s32.totalorder %s34, 0
      %p437 = por %p435, %p436
      %p438 = scmp.le.s32.totalorder 1, %s28
      %p439 = scmp.lt.s32.totalorder %s28, 3
      %p440 = pnand %p438, %p439
      %p441 = pneg %p440
      // Predicated region
      $region9: #{tpu_custom_call.1} parent=5 // pred_check
        _
      $region10: #{tpu_custom_call.1} parent=5 // pred_check_branch
        %443 = sbr.rel (%p440) target = $region12
      $region11: #{tpu_custom_call.1} parent=5 // pred_region
        %s444 = ssub.s32 %s28, 1
        // Predicated region
        $region13: #{tpu_custom_call.1} parent=11 // pred_check
          %p445 = pneg %p66
        $region14: #{tpu_custom_call.1} parent=11 // pred_check_branch
          %447 = sbr.rel (%p445) target = $region16
        $region15: #{tpu_custom_call.1} parent=11 // pred_region
          %s448 = smul.u32 2, %s37
          %s450 = ssub.s32 128, 128
          %451 = vsyncadd [#allocation4], %s450
          %s452 = smul.addr %s448, 64
          %s453 = scalar_lea.hbm %s0, %s452
          %s454 = sshll.u32 [#allocation3], 4
          %s455 = int_to_ptr.vmem [resolvable:$true] %s454
          %460 = dma.hbm_to_vmem [thread:$0]  %s453, 128, %s455, [#allocation4], 64, 64, 4
        $region16: #{tpu_custom_call.1} parent=11 // pred_fallthru
          _
        // Predicated region
        $region17: #{tpu_custom_call.1} parent=11 // pred_check
          %p461 = pneg %p92
        $region18: #{tpu_custom_call.1} parent=11 // pred_check_branch
          %463 = sbr.rel (%p461) target = $region20
        $region19: #{tpu_custom_call.1} parent=11 // pred_region
          %s464 = smul.u32 2, %s37
          %p465 = scmp.lt.s32.totalorder %s464, 1
          %s466 = scalar_select %p465, %s464, 1
          %s467 = scalar_lea.vmem %s1, %s466
          %s468 = smul.u32 2, %s37
        $region20: #{tpu_custom_call.1} parent=11 // pred_fallthru
          _
      $region12: #{tpu_custom_call.1} parent=5 // pred_fallthru
        _
      %p469 = scmp.lt.s32.totalorder %s28, 2
      // Predicated region
      $region21: #{tpu_custom_call.1} parent=5 // pred_check
        %p470 = pneg %p469
      $region22: #{tpu_custom_call.1} parent=5 // pred_check_branch
        %472 = sbr.rel (%p470) target = $region24
      $region23: #{tpu_custom_call.1} parent=5 // pred_region
        // Predicated region
        $region25: #{tpu_custom_call.1} parent=23 // pred_check
          %p473 = pneg %p112
        $region26: #{tpu_custom_call.1} parent=23 // pred_check_branch
          %475 = sbr.rel (%p473) target = $region28
        $region27: #{tpu_custom_call.1} parent=23 // pred_region
          %p476 = scmp.lt.s32.totalorder %s36, 1
          %s477 = scalar_select %p476, %s36, 1
          %s478 = smul.addr %s477, 4
          %s479 = smul.addr %s478, 4
          %s480 = scalar_lea.vmem %s2, %s479
        $region28: #{tpu_custom_call.1} parent=23 // pred_fallthru
          _
        // Predicated region
        $region29: #{tpu_custom_call.1} parent=23 // pred_check
          %p481 = pneg %p138
        $region30: #{tpu_custom_call.1} parent=23 // pred_check_branch
          %483 = sbr.rel (%p481) target = $region32
        $region31: #{tpu_custom_call.1} parent=23 // pred_region
          %p484 = scmp.lt.s32.totalorder %s36, 1
          %s485 = scalar_select %p484, %s36, 1
          %s486 = scalar_lea.vmem %s3, %s485
        $region32: #{tpu_custom_call.1} parent=23 // pred_fallthru
          _
        // Predicated region
        $region33: #{tpu_custom_call.1} parent=23 // pred_check
          %p487 = pneg %p164
        $region34: #{tpu_custom_call.1} parent=23 // pred_check_branch
          %489 = sbr.rel (%p487) target = $region36
        $region35: #{tpu_custom_call.1} parent=23 // pred_region
          %p490 = scmp.lt.s32.totalorder %s36, 1
          %s491 = scalar_select %p490, %s36, 1
          %s492 = smul.addr %s491, 4
          %s493 = smul.addr %s492, 4
          %s494 = scalar_lea.vmem %s4, %s493
        $region36: #{tpu_custom_call.1} parent=23 // pred_fallthru
          _
        // Predicated region
        $region37: #{tpu_custom_call.1} parent=23 // pred_check
          %p495 = pneg %p190
        $region38: #{tpu_custom_call.1} parent=23 // pred_check_branch
          %497 = sbr.rel (%p495) target = $region40
        $region39: #{tpu_custom_call.1} parent=23 // pred_region
          %s498 = sand.u32 %s28, 1
          %s499 = scalar_lea.sflag [#allocation7], %s498
          %s500 = sand.u32 %s180, 1
          %s501 = scalar_lea.vmem [#allocation6], %s500
          %s503 = ssub.s32 16, 16
          %504 = vsyncadd %s499, %s503
          %s505 = smul.addr %s36, 16
          %s506 = scalar_lea.hbm %s5, %s505
          %s508 = sshll.u32 %s501, 4
          %s509 = int_to_ptr.vmem [resolvable:$true] %s508
          %511 = dma.hbm_to_vmem [thread:$0]  %s506, 16, %s509, %s499
        $region40: #{tpu_custom_call.1} parent=23 // pred_fallthru
          _
        // Predicated region
        $region41: #{tpu_custom_call.1} parent=23 // pred_check
          %p512 = pneg %p216
        $region42: #{tpu_custom_call.1} parent=23 // pred_check_branch
          %514 = sbr.rel (%p512) target = $region44
        $region43: #{tpu_custom_call.1} parent=23 // pred_region
          %s515 = sand.u32 %s28, 1
          %s516 = scalar_lea.sflag [#allocation7], %s515
          %s517 = sand.u32 %s206, 1
          %s518 = scalar_lea.vmem [#allocation8], %s517
          %s520 = ssub.s32 16, 16
          %521 = vsyncadd %s516, %s520
          %s522 = smul.addr %s36, 16
          %s523 = scalar_lea.hbm %s6, %s522
          %s525 = sshll.u32 %s518, 4
          %s526 = int_to_ptr.vmem [resolvable:$true] %s525
          %528 = dma.hbm_to_vmem [thread:$0]  %s523, 16, %s526, %s516
        $region44: #{tpu_custom_call.1} parent=23 // pred_fallthru
          _
        // Predicated region
        $region45: #{tpu_custom_call.1} parent=23 // pred_check
          %p529 = pneg %p242
        $region46: #{tpu_custom_call.1} parent=23 // pred_check_branch
          %531 = sbr.rel (%p529) target = $region48
        $region47: #{tpu_custom_call.1} parent=23 // pred_region
          %s532 = sand.u32 %s28, 1
          %s533 = scalar_lea.sflag [#allocation10], %s532
          %s534 = sand.u32 %s232, 1
          %s535 = scalar_lea.vmem [#allocation9], %s534
          %s537 = ssub.s32 16, 16
          %538 = vsyncadd %s533, %s537
          %s539 = smul.addr %s36, 16
          %s540 = scalar_lea.hbm %s7, %s539
          %s542 = sshll.u32 %s535, 4
          %s543 = int_to_ptr.vmem [resolvable:$true] %s542
          %545 = dma.hbm_to_vmem [thread:$0]  %s540, 16, %s543, %s533
        $region48: #{tpu_custom_call.1} parent=23 // pred_fallthru
          _
        // Predicated region
        $region49: #{tpu_custom_call.1} parent=23 // pred_check
          %p546 = pneg %p268
        $region50: #{tpu_custom_call.1} parent=23 // pred_check_branch
          %548 = sbr.rel (%p546) target = $region52
        $region51: #{tpu_custom_call.1} parent=23 // pred_region
          %p549 = scmp.lt.s32.totalorder %s36, 1
          %s550 = scalar_select %p549, %s36, 1
          %s551 = smul.addr %s550, 4
          %s552 = smul.addr %s551, 4
          %s553 = scalar_lea.vmem %s8, %s552
        $region52: #{tpu_custom_call.1} parent=23 // pred_fallthru
          _
        // Predicated region
        $region53: #{tpu_custom_call.1} parent=23 // pred_check
          %p554 = pneg %p294
        $region54: #{tpu_custom_call.1} parent=23 // pred_check_branch
          %556 = sbr.rel (%p554) target = $region56
        $region55: #{tpu_custom_call.1} parent=23 // pred_region
          %s557 = sand.u32 %s28, 1
          %s558 = scalar_lea.sflag [#allocation10], %s557
          %s559 = sand.u32 %s284, 1
          %s560 = scalar_lea.vmem [#allocation11], %s559
          %s562 = ssub.s32 16, 16
          %563 = vsyncadd %s558, %s562
          %s564 = smul.addr %s36, 16
          %s565 = scalar_lea.hbm %s9, %s564
          %s567 = sshll.u32 %s560, 4
          %s568 = int_to_ptr.vmem [resolvable:$true] %s567
          %570 = dma.hbm_to_vmem [thread:$0]  %s565, 16, %s568, %s558
        $region56: #{tpu_custom_call.1} parent=23 // pred_fallthru
          _
        // Predicated region
        $region57: #{tpu_custom_call.1} parent=23 // pred_check
          %p571 = pneg %p320
        $region58: #{tpu_custom_call.1} parent=23 // pred_check_branch
          %573 = sbr.rel (%p571) target = $region60
        $region59: #{tpu_custom_call.1} parent=23 // pred_region
          %p574 = scmp.lt.s32.totalorder %s36, 1
          %s575 = scalar_select %p574, %s36, 1
          %s576 = smul.addr %s575, 8
          %s577 = smul.addr %s576, 4
          %s578 = scalar_lea.vmem %s10, %s577
        $region60: #{tpu_custom_call.1} parent=23 // pred_fallthru
          _
        // Predicated region
        $region61: #{tpu_custom_call.1} parent=23 // pred_check
          %p579 = pneg %p346
        $region62: #{tpu_custom_call.1} parent=23 // pred_check_branch
          %581 = sbr.rel (%p579) target = $region64
        $region63: #{tpu_custom_call.1} parent=23 // pred_region
          %p582 = scmp.lt.s32.totalorder %s36, 1
          %s583 = scalar_select %p582, %s36, 1
          %s584 = scalar_lea.vmem %s11, %s583
        $region64: #{tpu_custom_call.1} parent=23 // pred_fallthru
          _
        // Predicated region
        $region65: #{tpu_custom_call.1} parent=23 // pred_check
          %p585 = pneg %p372
        $region66: #{tpu_custom_call.1} parent=23 // pred_check_branch
          %587 = sbr.rel (%p585) target = $region68
        $region67: #{tpu_custom_call.1} parent=23 // pred_region
          %p588 = scmp.lt.s32.totalorder %s36, 1
          %s589 = scalar_select %p588, %s36, 1
          %s590 = scalar_lea.vmem %s12, %s589
        $region68: #{tpu_custom_call.1} parent=23 // pred_fallthru
          _
        // Predicated region
        $region69: #{tpu_custom_call.1} parent=23 // pred_check
          %p591 = pneg %p398
        $region70: #{tpu_custom_call.1} parent=23 // pred_check_branch
          %593 = sbr.rel (%p591) target = $region72
        $region71: #{tpu_custom_call.1} parent=23 // pred_region
          %p594 = scmp.lt.s32.totalorder %s36, 1
          %s595 = scalar_select %p594, %s36, 1
          %s596 = scalar_lea.vmem %s13, %s595
        $region72: #{tpu_custom_call.1} parent=23 // pred_fallthru
          _
      $region24: #{tpu_custom_call.1} parent=5 // pred_fallthru
        _
      %p597 = scmp.le.s32.totalorder 1, %s28
      %p598 = scmp.lt.s32.totalorder %s28, 3
      %p599 = pnand %p597, %p598
      %p600 = pneg %p599
      // Predicated region
      $region73: #{tpu_custom_call.1} parent=5 // pred_check
        _
      $region74: #{tpu_custom_call.1} parent=5 // pred_check_branch
        %602 = sbr.rel (%p599) target = $region76
      $region75: #{tpu_custom_call.1} parent=5 // pred_region
        %s603 = ssub.s32 %s28, 1
        // Predicated region
        $region77: #{tpu_custom_call.1} parent=75 // pred_check
          %p604 = pneg %p66
        $region78: #{tpu_custom_call.1} parent=75 // pred_check_branch
          %606 = sbr.rel (%p604) target = $region80
        $region79: #{tpu_custom_call.1} parent=75 // pred_region
          %607 = dma.done [#allocation4], 128
        $region80: #{tpu_custom_call.1} parent=75 // pred_fallthru
          _
        %s608 = sand.u32 %s33, 1
        %s609 = scalar_lea.sflag [#allocation7], %s608
        %s610 = sand.u32 %s183, 1
        %s611 = scalar_lea.vmem [#allocation6], %s610
        // Predicated region
        $region81: #{tpu_custom_call.1} parent=75 // pred_check
          %p612 = pneg %p196
        $region82: #{tpu_custom_call.1} parent=75 // pred_check_branch
          %614 = sbr.rel (%p612) target = $region84
        $region83: #{tpu_custom_call.1} parent=75 // pred_region
          %615 = dma.done %s609, 16
        $region84: #{tpu_custom_call.1} parent=75 // pred_fallthru
          _
        %s616 = sand.u32 %s33, 1
        %s617 = scalar_lea.sflag [#allocation7], %s616
        %s618 = sand.u32 %s209, 1
        %s619 = scalar_lea.vmem [#allocation8], %s618
        // Predicated region
        $region85: #{tpu_custom_call.1} parent=75 // pred_check
          %p620 = pneg %p222
        $region86: #{tpu_custom_call.1} parent=75 // pred_check_branch
          %622 = sbr.rel (%p620) target = $region88
        $region87: #{tpu_custom_call.1} parent=75 // pred_region
          %623 = dma.done %s617, 16
        $region88: #{tpu_custom_call.1} parent=75 // pred_fallthru
          _
        %s624 = sand.u32 %s33, 1
        %s625 = scalar_lea.sflag [#allocation10], %s624
        %s626 = sand.u32 %s235, 1
        %s627 = scalar_lea.vmem [#allocation9], %s626
        // Predicated region
        $region89: #{tpu_custom_call.1} parent=75 // pred_check
          %p628 = pneg %p248
        $region90: #{tpu_custom_call.1} parent=75 // pred_check_branch
          %630 = sbr.rel (%p628) target = $region92
        $region91: #{tpu_custom_call.1} parent=75 // pred_region
          %631 = dma.done %s625, 16
        $region92: #{tpu_custom_call.1} parent=75 // pred_fallthru
          _
        %s632 = sand.u32 %s33, 1
        %s633 = scalar_lea.sflag [#allocation10], %s632
        %s634 = sand.u32 %s287, 1
        %s635 = scalar_lea.vmem [#allocation11], %s634
        // Predicated region
        $region93: #{tpu_custom_call.1} parent=75 // pred_check
          %p636 = pneg %p300
        $region94: #{tpu_custom_call.1} parent=75 // pred_check_branch
          %638 = sbr.rel (%p636) target = $region96
        $region95: #{tpu_custom_call.1} parent=75 // pred_region
          %639 = dma.done %s633, 16
        $region96: #{tpu_custom_call.1} parent=75 // pred_fallthru
          _
        %p640 = pneg %p66
        %p641 = pneg %p63
        %s642 = smul.u32 2, %s37
        %p643 = scmp.lt.s32.totalorder %s642, 1
        %s644 = scalar_select %p643, %s642, 1
        %s645 = scalar_lea.vmem %s1, %s644
        %p646 = pneg %p92
        %p647 = pneg %p89
        %p648 = scmp.lt.s32.totalorder %s38, 1
        %s649 = scalar_select %p648, %s38, 1
        %s650 = smul.addr %s649, 4
        %s651 = smul.addr %s650, 4
        %s652 = scalar_lea.vmem %s2, %s651
        %p653 = pneg %p118
        %p654 = pneg %p115
        %p655 = scmp.lt.s32.totalorder %s38, 1
        %s656 = scalar_select %p655, %s38, 1
        %s657 = scalar_lea.vmem %s3, %s656
        %p658 = pneg %p144
        %p659 = pneg %p141
        %p660 = scmp.lt.s32.totalorder %s38, 1
        %s661 = scalar_select %p660, %s38, 1
        %s662 = smul.addr %s661, 4
        %s663 = smul.addr %s662, 4
        %s664 = scalar_lea.vmem %s4, %s663
        %p665 = pneg %p170
        %p666 = pneg %p167
        %s667 = sand.u32 %s33, 1
        %s668 = scalar_lea.sflag [#allocation7], %s667
        %s669 = sand.u32 %s183, 1
        %s670 = scalar_lea.vmem [#allocation6], %s669
        %p671 = pneg %p196
        %p672 = pneg %p193
        %s673 = sand.u32 %s33, 1
        %s674 = scalar_lea.sflag [#allocation7], %s673
        %s675 = sand.u32 %s209, 1
        %s676 = scalar_lea.vmem [#allocation8], %s675
        %p677 = pneg %p222
        %p678 = pneg %p219
        %s679 = sand.u32 %s33, 1
        %s680 = scalar_lea.sflag [#allocation10], %s679
        %s681 = sand.u32 %s235, 1
        %s682 = scalar_lea.vmem [#allocation9], %s681
        %p683 = pneg %p248
        %p684 = pneg %p245
        %p685 = scmp.lt.s32.totalorder %s38, 1
        %s686 = scalar_select %p685, %s38, 1
        %s687 = smul.addr %s686, 4
        %s688 = smul.addr %s687, 4
        %s689 = scalar_lea.vmem %s8, %s688
        %p690 = pneg %p274
        %p691 = pneg %p271
        %s692 = sand.u32 %s33, 1
        %s693 = scalar_lea.sflag [#allocation10], %s692
        %s694 = sand.u32 %s287, 1
        %s695 = scalar_lea.vmem [#allocation11], %s694
        %p696 = pneg %p300
        %p697 = pneg %p297
        %p698 = scmp.lt.s32.totalorder %s38, 1
        %s699 = scalar_select %p698, %s38, 1
        %s700 = smul.addr %s699, 8
        %s701 = smul.addr %s700, 4
        %s702 = scalar_lea.vmem %s10, %s701
        %p703 = pneg %p326
        %p704 = pneg %p323
        %p705 = scmp.lt.s32.totalorder %s38, 1
        %s706 = scalar_select %p705, %s38, 1
        %s707 = scalar_lea.vmem %s11, %s706
        %p708 = pneg %p352
        %p709 = pneg %p349
        %p710 = scmp.lt.s32.totalorder %s38, 1
        %s711 = scalar_select %p710, %s38, 1
        %s712 = scalar_lea.vmem %s12, %s711
        %p713 = pneg %p378
        %p714 = pneg %p375
        %p715 = scmp.lt.s32.totalorder %s38, 1
        %s716 = scalar_select %p715, %s38, 1
        %s717 = scalar_lea.vmem %s13, %s716
        %p718 = pneg %p404
        %p719 = pneg %p401
        %p720 = pneg %p430
        %p721 = pneg %p427
        %s722 = smul.u32 2, %s37
        %s723 = smul.u32 2, %s37
        %p724 = scmp.lt.s32.totalorder %s723, 1
        %s725 = scalar_select %p724, %s723, 1
        %s726 = scalar_lea.vmem %s1, %s725
        %s727 = smul.u32 2, %s37
        %p728 = scmp.lt.s32.totalorder %s38, 1
        %s729 = scalar_select %p728, %s38, 1
        %s730 = smul.addr %s729, 4
        %s731 = smul.addr %s730, 4
        %s732 = scalar_lea.vmem %s2, %s731
        %p733 = scmp.lt.s32.totalorder %s38, 1
        %s734 = scalar_select %p733, %s38, 1
        %s735 = scalar_lea.vmem %s3, %s734
        %p736 = scmp.lt.s32.totalorder %s38, 1
        %s737 = scalar_select %p736, %s38, 1
        %s738 = smul.addr %s737, 4
        %s739 = smul.addr %s738, 4
        %s740 = scalar_lea.vmem %s4, %s739
        %p741 = scmp.lt.s32.totalorder %s38, 1
        %s742 = scalar_select %p741, %s38, 1
        %s743 = smul.addr %s742, 4
        %s744 = smul.addr %s743, 4
        %s745 = scalar_lea.vmem %s8, %s744
        %p746 = scmp.lt.s32.totalorder %s38, 1
        %s747 = scalar_select %p746, %s38, 1
        %s748 = smul.addr %s747, 8
        %s749 = smul.addr %s748, 4
        %s750 = scalar_lea.vmem %s10, %s749
        %p751 = scmp.lt.s32.totalorder %s38, 1
        %s752 = scalar_select %p751, %s38, 1
        %s753 = scalar_lea.vmem %s11, %s752
        %p754 = scmp.lt.s32.totalorder %s38, 1
        %s755 = scalar_select %p754, %s38, 1
        %s756 = scalar_lea.vmem %s12, %s755
        %p757 = scmp.lt.s32.totalorder %s38, 1
        %s758 = scalar_select %p757, %s38, 1
        %s759 = scalar_lea.vmem %s13, %s758
        %s760 = smul.u32 2, %s37
        %p762 = scmp.eq.s32.totalorder %s38, 0
        // Predicated region
        $region97: #{tpu_custom_call.1} parent=75 // pred_check
          %p763 = pneg %p762
        $region98: #{tpu_custom_call.1} parent=75 // pred_check_branch
          %765 = sbr.rel (%p763) target = $region100
        $region99: #{tpu_custom_call.1} parent=75 // pred_region
          %v766 = vld [vmem:[#allocation3] sm:$0xf]
          %v767 = vld [vmem:[#allocation3 + $0x4] sm:$0xf]
          %v768 = vunpack.c.l.bf16 %v766
          %v769 = vunpack.c.l.bf16 %v767
          %vm770 = vcmask 261120
          %771 = vst.msk [vmem:[#allocation2] sm:$0xff] %vm770, %v768
          %772 = vst.msk [vmem:[#allocation2 + $0x8] sm:$0xff] %vm770, %v769
        $region100: #{tpu_custom_call.1} parent=75 // pred_fallthru
          _
        %v773 = vld [vmem:[#allocation2] sm:$0xff]
        %v774 = vld [vmem:[#allocation2 + $0x8] sm:$0xff]
        %v775 = vpack.c.bf16 %v774, %v773
        %v776 = vld [vmem:[%s732] sm:$0xf]
        %v777 = vld [vmem:[%s732 + $0x4] sm:$0xf]
        %v778 = vld [vmem:[%s732 + $0x8] sm:$0xf]
        %v779 = vld [vmem:[%s732 + $0xc] sm:$0xf]
        %v780 = vld [vmem:[%s735] sm:$0x1]
        %v782 = vlaneseq
        %v783 = vshrl.u32 %v782, 7
        %v784 = vsub.s32 0, %v783
        %v785 = vrot.slane %v780, %v784
        %v791 = vunpack.c.l.b16 %v776
        %v792 = vunpack.c.l.b16 %v777
        %v793 = vunpack.c.l.b16 %v778
        %v794 = vunpack.c.l.b16 %v779
        %v795 = vpack.c.b16 %v792, %v791
        %v796 = vpack.c.b16 %v794, %v793
        %vm799 = vcmask 261120
        %v801 = vsel %vm799, %v775, 0
        %803 = vmatprep.subr.bf16.mxu0 0
        %804 = vmatpush1.bf16.msra.mxu0 %v795
        %805 = vmatprep.subr.bf16.mxu0 0
        %806 = vmatpush1.bf16.msra.mxu0 %v796
        %807 = vmatprep.subr.bf16.mxu0 0
        %808 = vmatpush1.bf16.msra.mxu0 0
        %809 = vmatprep.subr.bf16.mxu0 0
        %810 = vmatpush1.bf16.msra.mxu0 0
        %811 = vmatprep.subr.bf16.mxu0 0
        %812 = vmatpush1.bf16.msra.mxu0 0
        %813 = vmatprep.subr.bf16.mxu0 0
        %814 = vmatpush1.bf16.msra.mxu0 0
        %815 = vmatprep.subr.bf16.mxu0 0
        %816 = vmatpush1.bf16.msra.mxu0 0
        %817 = vmatprep.subr.bf16.mxu0 0
        %818 = vmatpush1.bf16.msra.mxu0 0
        %819 = vmatprep.subr.bf16.mxu0 0
        %820 = vmatpush1.bf16.msra.mxu0 0
        %821 = vmatprep.subr.bf16.mxu0 0
        %822 = vmatpush1.bf16.msra.mxu0 0
        %823 = vmatprep.subr.bf16.mxu0 0
        %824 = vmatpush1.bf16.msra.mxu0 0
        %825 = vmatprep.subr.bf16.mxu0 0
        %826 = vmatpush1.bf16.msra.mxu0 0
        %827 = vmatprep.subr.bf16.mxu0 0
        %828 = vmatpush1.bf16.msra.mxu0 0
        %829 = vmatprep.subr.bf16.mxu0 0
        %830 = vmatpush1.bf16.msra.mxu0 0
        %831 = vmatprep.subr.bf16.mxu0 0
        %832 = vmatpush1.bf16.msra.mxu0 0
        %833 = vmatprep.subr.bf16.mxu0 0
        %834 = vmatpush1.bf16.msra.mxu0 0
        %835 = vmatprep.mubr.bf16.mxu0 0
        %836 = vmatmul.mubr.bf16.gmra.mrb[0].mxu0 %v801
        %v837 = vpop.f32.mrb[0].mxu0
        %v838 = vadd.f32 %v785, %v837
        %v839 = vpop.f32.mrb[0].mxu0
        %v840 = vpop.f32.mrb[0].mxu0
        %v841 = vadd.f32 %v785, %v840
        %v842 = vpop.f32.mrb[0].mxu0
        %843 = vdwg.mxu0
        %v844 = vld [vmem:[%s726] sm:$0x1]
        %v845 = vld [vmem:[%s726 + $0x1] sm:$0x1]
        %v846 = vpack.c.bf16 %v838, %v838
        %v847 = vpack.c.bf16 %v841, %v841
        %v850 = vlaneseq
        %v851 = vshrl.u32 %v850, 7
        %v852 = vsub.s32 0, %v851
        %v853 = vrot.slane %v844, %v852
        %v854 = vlaneseq
        %v855 = vshrl.u32 %v854, 7
        %v856 = vsub.s32 0, %v855
        %v857 = vrot.slane %v845, %v856
        %861 = vrot.lane.b32.xlu0 %v846, 96
        %v862 = vpop.permute.xlu0 %861
        %vm863 = vcmask 130048
        %v865 = vsel %vm863, %v846, 0
        %v868 = vsel %vm863, %v862, 0
        %870 = vmatprep.subr.bf16.mxu0 0
        %871 = vmatpush1.bf16.xpose.msra.mxu0 %v868
        %872 = vmatprep.subr.bf16.mxu0 0
        %873 = vmatpush1.bf16.xpose.msra.mxu0 0
        %874 = vmatprep.subr.bf16.mxu0 0
        %875 = vmatpush1.bf16.xpose.msra.mxu0 0
        %876 = vmatprep.subr.bf16.mxu0 0
        %877 = vmatpush1.bf16.xpose.msra.mxu0 0
        %878 = vmatprep.subr.bf16.mxu0 0
        %879 = vmatpush1.bf16.xpose.msra.mxu0 0
        %880 = vmatprep.subr.bf16.mxu0 0
        %881 = vmatpush1.bf16.xpose.msra.mxu0 0
        %882 = vmatprep.subr.bf16.mxu0 0
        %883 = vmatpush1.bf16.xpose.msra.mxu0 0
        %884 = vmatprep.subr.bf16.mxu0 0
        %885 = vmatpush1.bf16.xpose.msra.mxu0 0
        %886 = vmatprep.subr.bf16.mxu0 0
        %887 = vmatpush1.bf16.xpose.msra.mxu0 0
        %888 = vmatprep.subr.bf16.mxu0 0
        %889 = vmatpush1.bf16.xpose.msra.mxu0 0
        %890 = vmatprep.subr.bf16.mxu0 0
        %891 = vmatpush1.bf16.xpose.msra.mxu0 0
        %892 = vmatprep.subr.bf16.mxu0 0
        %893 = vmatpush1.bf16.xpose.msra.mxu0 0
        %894 = vmatprep.subr.bf16.mxu0 0
        %895 = vmatpush1.bf16.xpose.msra.mxu0 0
        %896 = vmatprep.subr.bf16.mxu0 0
        %897 = vmatpush1.bf16.xpose.msra.mxu0 0
        %898 = vmatprep.subr.bf16.mxu0 0
        %899 = vmatpush1.bf16.xpose.msra.mxu0 0
        %900 = vmatprep.subr.bf16.mxu0 0
        %901 = vmatpush1.bf16.xpose.msra.mxu0 0
        %902 = vmatprep.mubr.bf16.mxu0 0
        %903 = vmatmul.mubr.bf16.gmra.mrb[0].mxu0 %v865
        %v904 = vpop.f32.mrb[0].mxu0
        %v905 = vadd.f32 %v853, %v904
        %v906 = vpop.f32.mrb[0].mxu0
        %v907 = vpop.f32.mrb[0].mxu0
        %v908 = vpop.f32.mrb[0].mxu0
        %909 = vdwg.mxu0
        %911 = vrot.lane.b32.xlu0 %v847, 96
        %v912 = vpop.permute.xlu0 %911
        %v914 = vsel %vm863, %v847, 0
        %v917 = vsel %vm863, %v912, 0
        %919 = vmatprep.subr.bf16.mxu0 0
        %920 = vmatpush1.bf16.xpose.msra.mxu0 %v917
        %921 = vmatprep.subr.bf16.mxu0 0
        %922 = vmatpush1.bf16.xpose.msra.mxu0 0
        %923 = vmatprep.subr.bf16.mxu0 0
        %924 = vmatpush1.bf16.xpose.msra.mxu0 0
        %925 = vmatprep.subr.bf16.mxu0 0
        %926 = vmatpush1.bf16.xpose.msra.mxu0 0
        %927 = vmatprep.subr.bf16.mxu0 0
        %928 = vmatpush1.bf16.xpose.msra.mxu0 0
        %929 = vmatprep.subr.bf16.mxu0 0
        %930 = vmatpush1.bf16.xpose.msra.mxu0 0
        %931 = vmatprep.subr.bf16.mxu0 0
        %932 = vmatpush1.bf16.xpose.msra.mxu0 0
        %933 = vmatprep.subr.bf16.mxu0 0
        %934 = vmatpush1.bf16.xpose.msra.mxu0 0
        %935 = vmatprep.subr.bf16.mxu0 0
        %936 = vmatpush1.bf16.xpose.msra.mxu0 0
        %937 = vmatprep.subr.bf16.mxu0 0
        %938 = vmatpush1.bf16.xpose.msra.mxu0 0
        %939 = vmatprep.subr.bf16.mxu0 0
        %940 = vmatpush1.bf16.xpose.msra.mxu0 0
        %941 = vmatprep.subr.bf16.mxu0 0
        %942 = vmatpush1.bf16.xpose.msra.mxu0 0
        %943 = vmatprep.subr.bf16.mxu0 0
        %944 = vmatpush1.bf16.xpose.msra.mxu0 0
        %945 = vmatprep.subr.bf16.mxu0 0
        %946 = vmatpush1.bf16.xpose.msra.mxu0 0
        %947 = vmatprep.subr.bf16.mxu0 0
        %948 = vmatpush1.bf16.xpose.msra.mxu0 0
        %949 = vmatprep.subr.bf16.mxu0 0
        %950 = vmatpush1.bf16.xpose.msra.mxu0 0
        %951 = vmatprep.mubr.bf16.mxu0 0
        %952 = vmatmul.mubr.bf16.gmra.mrb[0].mxu0 %v914
        %v953 = vpop.f32.mrb[0].mxu0
        %v954 = vadd.f32 %v857, %v953
        %v955 = vpop.f32.mrb[0].mxu0
        %v956 = vpop.f32.mrb[0].mxu0
        %v957 = vpop.f32.mrb[0].mxu0
        %958 = vdwg.mxu0
        %vm959 = vcmask 64512
        %v960 = vsel %vm959, %v905, -inf
        %961 = vmax.xlane.f32.xlu0 %v960
        %v962 = vpop.xlane.xlu0 %961
        %v963 = vsel %vm959, %v954, -inf
        %964 = vmax.xlane.f32.xlu0 %v963
        %v965 = vpop.xlane.xlu0 %964
        %v966 = vsub.f32 %v905, %v962
        %v967 = vsub.f32 %v954, %v965
        %v968 = vmul.f32 %v966, 1.442695
        %v969 = vpow.pop %v968
        %v970 = vmul.f32 %v967, 1.442695
        %v971 = vpow.pop %v970
        %v972 = vsel %vm959, %v969, 0.0
        %973 = vadd.xlane.f32.xlu0 %v972
        %v974 = vpop.xlane.xlu0 %973
        %v975 = vsel %vm959, %v971, 0.0
        %976 = vadd.xlane.f32.xlu0 %v975
        %v977 = vpop.xlane.xlu0 %976
        %v978 = vrcp.pop %v974
        %v979 = vrcp.pop %v977
        %v980 = vmul.f32 %v969, %v978
        %v981 = vmul.f32 %v971, %v979
        %v982 = vpack.c.bf16 %v980, %v980
        %v983 = vpack.c.bf16 %v981, %v981
        %984 = vrot.lane.b32.xlu0 %v846, 64
        %v985 = vpop.permute.xlu0 %984
        %v987 = vsel %vm959, %v982, 0
        %vm989 = vcmask 1043456
        %v991 = vsel %vm989, %v985, 0
        %993 = vmatprep.subr.bf16.mxu0 0
        %994 = vmatpush1.bf16.msra.mxu0 %v991
        %995 = vmatprep.subr.bf16.mxu0 0
        %996 = vmatpush1.bf16.msra.mxu0 0
        %997 = vmatprep.subr.bf16.mxu0 0
        %998 = vmatpush1.bf16.msra.mxu0 0
        %999 = vmatprep.subr.bf16.mxu0 0
        %1000 = vmatpush1.bf16.msra.mxu0 0
        %1001 = vmatprep.subr.bf16.mxu0 0
        %1002 = vmatpush1.bf16.msra.mxu0 0
        %1003 = vmatprep.subr.bf16.mxu0 0
        %1004 = vmatpush1.bf16.msra.mxu0 0
        %1005 = vmatprep.subr.bf16.mxu0 0
        %1006 = vmatpush1.bf16.msra.mxu0 0
        %1007 = vmatprep.subr.bf16.mxu0 0
        %1008 = vmatpush1.bf16.msra.mxu0 0
        %1009 = vmatprep.subr.bf16.mxu0 0
        %1010 = vmatpush1.bf16.msra.mxu0 0
        %1011 = vmatprep.subr.bf16.mxu0 0
        %1012 = vmatpush1.bf16.msra.mxu0 0
        %1013 = vmatprep.subr.bf16.mxu0 0
        %1014 = vmatpush1.bf16.msra.mxu0 0
        %1015 = vmatprep.subr.bf16.mxu0 0
        %1016 = vmatpush1.bf16.msra.mxu0 0
        %1017 = vmatprep.subr.bf16.mxu0 0
        %1018 = vmatpush1.bf16.msra.mxu0 0
        %1019 = vmatprep.subr.bf16.mxu0 0
        %1020 = vmatpush1.bf16.msra.mxu0 0
        %1021 = vmatprep.subr.bf16.mxu0 0
        %1022 = vmatpush1.bf16.msra.mxu0 0
        %1023 = vmatprep.subr.bf16.mxu0 0
        %1024 = vmatpush1.bf16.msra.mxu0 0
        %1025 = vmatprep.mubr.bf16.mxu0 0
        %1026 = vmatmul.mubr.bf16.gmra.mrb[0].mxu0 %v987
        %v1027 = vpop.f32.mrb[0].mxu0
        %v1028 = vadd.f32 0.0, %v1027
        %v1029 = vpop.f32.mrb[0].mxu0
        %v1030 = vpop.f32.mrb[0].mxu0
        %v1031 = vpop.f32.mrb[0].mxu0
        %1032 = vdwg.mxu0
        %1033 = vrot.lane.b32.xlu0 %v847, 64
        %v1034 = vpop.permute.xlu0 %1033
        %v1036 = vsel %vm959, %v983, 0
        %v1039 = vsel %vm989, %v1034, 0
        %1041 = vmatprep.subr.bf16.mxu0 0
        %1042 = vmatpush1.bf16.msra.mxu0 %v1039
        %1043 = vmatprep.subr.bf16.mxu0 0
        %1044 = vmatpush1.bf16.msra.mxu0 0
        %1045 = vmatprep.subr.bf16.mxu0 0
        %1046 = vmatpush1.bf16.msra.mxu0 0
        %1047 = vmatprep.subr.bf16.mxu0 0
        %1048 = vmatpush1.bf16.msra.mxu0 0
        %1049 = vmatprep.subr.bf16.mxu0 0
        %1050 = vmatpush1.bf16.msra.mxu0 0
        %1051 = vmatprep.subr.bf16.mxu0 0
        %1052 = vmatpush1.bf16.msra.mxu0 0
        %1053 = vmatprep.subr.bf16.mxu0 0
        %1054 = vmatpush1.bf16.msra.mxu0 0
        %1055 = vmatprep.subr.bf16.mxu0 0
        %1056 = vmatpush1.bf16.msra.mxu0 0
        %1057 = vmatprep.subr.bf16.mxu0 0
        %1058 = vmatpush1.bf16.msra.mxu0 0
        %1059 = vmatprep.subr.bf16.mxu0 0
        %1060 = vmatpush1.bf16.msra.mxu0 0
        %1061 = vmatprep.subr.bf16.mxu0 0
        %1062 = vmatpush1.bf16.msra.mxu0 0
        %1063 = vmatprep.subr.bf16.mxu0 0
        %1064 = vmatpush1.bf16.msra.mxu0 0
        %1065 = vmatprep.subr.bf16.mxu0 0
        %1066 = vmatpush1.bf16.msra.mxu0 0
        %1067 = vmatprep.subr.bf16.mxu0 0
        %1068 = vmatpush1.bf16.msra.mxu0 0
        %1069 = vmatprep.subr.bf16.mxu0 0
        %1070 = vmatpush1.bf16.msra.mxu0 0
        %1071 = vmatprep.subr.bf16.mxu0 0
        %1072 = vmatpush1.bf16.msra.mxu0 0
        %1073 = vmatprep.mubr.bf16.mxu0 0
        %1074 = vmatmul.mubr.bf16.gmra.mrb[0].mxu0 %v1036
        %v1075 = vpop.f32.mrb[0].mxu0
        %v1076 = vadd.f32 0.0, %v1075
        %v1077 = vpop.f32.mrb[0].mxu0
        %v1078 = vpop.f32.mrb[0].mxu0
        %v1079 = vpop.f32.mrb[0].mxu0
        %1080 = vdwg.mxu0
        %v1081 = vpack.c.bf16 %v1076, %v1028
        %v1082 = vld [vmem:[%s740] sm:$0xf]
        %v1083 = vld [vmem:[%s740 + $0x4] sm:$0xf]
        %1084 = vrot.lane.b32.xlu0 %v846, 112
        %v1085 = vpop.permute.xlu0 %1084
        %1086 = vrot.lane.b32.xlu0 %v846, 80
        %v1087 = vpop.permute.xlu0 %1086
        %v1089 = vsel %vm863, %v1085, 0
        %v1092 = vsel %vm863, %v1087, 0
        %1094 = vmatprep.subr.bf16.mxu0 0
        %1095 = vmatpush1.bf16.xpose.msra.mxu0 %v1092
        %1096 = vmatprep.subr.bf16.mxu0 0
        %1097 = vmatpush1.bf16.xpose.msra.mxu0 0
        %1098 = vmatprep.subr.bf16.mxu0 0
        %1099 = vmatpush1.bf16.xpose.msra.mxu0 0
        %1100 = vmatprep.subr.bf16.mxu0 0
        %1101 = vmatpush1.bf16.xpose.msra.mxu0 0
        %1102 = vmatprep.subr.bf16.mxu0 0
        %1103 = vmatpush1.bf16.xpose.msra.mxu0 0
        %1104 = vmatprep.subr.bf16.mxu0 0
        %1105 = vmatpush1.bf16.xpose.msra.mxu0 0
        %1106 = vmatprep.subr.bf16.mxu0 0
        %1107 = vmatpush1.bf16.xpose.msra.mxu0 0
        %1108 = vmatprep.subr.bf16.mxu0 0
        %1109 = vmatpush1.bf16.xpose.msra.mxu0 0
        %1110 = vmatprep.subr.bf16.mxu0 0
        %1111 = vmatpush1.bf16.xpose.msra.mxu0 0
        %1112 = vmatprep.subr.bf16.mxu0 0
        %1113 = vmatpush1.bf16.xpose.msra.mxu0 0
        %1114 = vmatprep.subr.bf16.mxu0 0
        %1115 = vmatpush1.bf16.xpose.msra.mxu0 0
        %1116 = vmatprep.subr.bf16.mxu0 0
        %1117 = vmatpush1.bf16.xpose.msra.mxu0 0
        %1118 = vmatprep.subr.bf16.mxu0 0
        %1119 = vmatpush1.bf16.xpose.msra.mxu0 0
        %1120 = vmatprep.subr.bf16.mxu0 0
        %1121 = vmatpush1.bf16.xpose.msra.mxu0 0
        %1122 = vmatprep.subr.bf16.mxu0 0
        %1123 = vmatpush1.bf16.xpose.msra.mxu0 0
        %1124 = vmatprep.subr.bf16.mxu0 0
        %1125 = vmatpush1.bf16.xpose.msra.mxu0 0
        %1126 = vmatprep.mubr.bf16.mxu0 0
        %1127 = vmatmul.mubr.bf16.gmra.mrb[0].mxu0 %v1089
        %v1128 = vpop.f32.mrb[0].mxu0
        %v1129 = vadd.f32 %v853, %v1128
        %v1130 = vpop.f32.mrb[0].mxu0
        %v1131 = vpop.f32.mrb[0].mxu0
        %v1132 = vpop.f32.mrb[0].mxu0
        %1133 = vdwg.mxu0
        %1134 = vrot.lane.b32.xlu0 %v847, 112
        %v1135 = vpop.permute.xlu0 %1134
        %1136 = vrot.lane.b32.xlu0 %v847, 80
        %v1137 = vpop.permute.xlu0 %1136
        %v1139 = vsel %vm863, %v1135, 0
        %v1142 = vsel %vm863, %v1137, 0
        %1144 = vmatprep.subr.bf16.mxu0 0
        %1145 = vmatpush1.bf16.xpose.msra.mxu0 %v1142
        %1146 = vmatprep.subr.bf16.mxu0 0
        %1147 = vmatpush1.bf16.xpose.msra.mxu0 0
        %1148 = vmatprep.subr.bf16.mxu0 0
        %1149 = vmatpush1.bf16.xpose.msra.mxu0 0
        %1150 = vmatprep.subr.bf16.mxu0 0
        %1151 = vmatpush1.bf16.xpose.msra.mxu0 0
        %1152 = vmatprep.subr.bf16.mxu0 0
        %1153 = vmatpush1.bf16.xpose.msra.mxu0 0
        %1154 = vmatprep.subr.bf16.mxu0 0
        %1155 = vmatpush1.bf16.xpose.msra.mxu0 0
        %1156 = vmatprep.subr.bf16.mxu0 0
        %1157 = vmatpush1.bf16.xpose.msra.mxu0 0
        %1158 = vmatprep.subr.bf16.mxu0 0
        %1159 = vmatpush1.bf16.xpose.msra.mxu0 0
        %1160 = vmatprep.subr.bf16.mxu0 0
        %1161 = vmatpush1.bf16.xpose.msra.mxu0 0
        %1162 = vmatprep.subr.bf16.mxu0 0
        %1163 = vmatpush1.bf16.xpose.msra.mxu0 0
        %1164 = vmatprep.subr.bf16.mxu0 0
        %1165 = vmatpush1.bf16.xpose.msra.mxu0 0
        %1166 = vmatprep.subr.bf16.mxu0 0
        %1167 = vmatpush1.bf16.xpose.msra.mxu0 0
        %1168 = vmatprep.subr.bf16.mxu0 0
        %1169 = vmatpush1.bf16.xpose.msra.mxu0 0
        %1170 = vmatprep.subr.bf16.mxu0 0
        %1171 = vmatpush1.bf16.xpose.msra.mxu0 0
        %1172 = vmatprep.subr.bf16.mxu0 0
        %1173 = vmatpush1.bf16.xpose.msra.mxu0 0
        %1174 = vmatprep.subr.bf16.mxu0 0
        %1175 = vmatpush1.bf16.xpose.msra.mxu0 0
        %1176 = vmatprep.mubr.bf16.mxu0 0
        %1177 = vmatmul.mubr.bf16.gmra.mrb[0].mxu0 %v1139
        %v1178 = vpop.f32.mrb[0].mxu0
        %v1179 = vadd.f32 %v857, %v1178
        %v1180 = vpop.f32.mrb[0].mxu0
        %v1181 = vpop.f32.mrb[0].mxu0
        %v1182 = vpop.f32.mrb[0].mxu0
        %1183 = vdwg.mxu0
        %v1184 = vsel %vm959, %v1129, -inf
        %1185 = vmax.xlane.f32.xlu0 %v1184
        %v1186 = vpop.xlane.xlu0 %1185
        %v1187 = vsel %vm959, %v1179, -inf
        %1188 = vmax.xlane.f32.xlu0 %v1187
        %v1189 = vpop.xlane.xlu0 %1188
        %v1190 = vsub.f32 %v1129, %v1186
        %v1191 = vsub.f32 %v1179, %v1189
        %v1192 = vmul.f32 %v1190, 1.442695
        %v1193 = vpow.pop %v1192
        %v1194 = vmul.f32 %v1191, 1.442695
        %v1195 = vpow.pop %v1194
        %v1196 = vsel %vm959, %v1193, 0.0
        %1197 = vadd.xlane.f32.xlu0 %v1196
        %v1198 = vpop.xlane.xlu0 %1197
        %v1199 = vsel %vm959, %v1195, 0.0
        %1200 = vadd.xlane.f32.xlu0 %v1199
        %v1201 = vpop.xlane.xlu0 %1200
        %v1202 = vrcp.pop %v1198
        %v1203 = vrcp.pop %v1201
        %v1204 = vmul.f32 %v1193, %v1202
        %v1205 = vmul.f32 %v1195, %v1203
        %v1206 = vpack.c.bf16 %v1204, %v1204
        %v1207 = vpack.c.bf16 %v1205, %v1205
        %1208 = vrot.lane.b32.xlu0 %v846, 48
        %v1209 = vpop.permute.xlu0 %1208
        %v1211 = vsel %vm959, %v1206, 0
        %v1214 = vsel %vm989, %v1209, 0
        %1216 = vmatprep.subr.bf16.mxu0 0
        %1217 = vmatpush1.bf16.msra.mxu0 %v1214
        %1218 = vmatprep.subr.bf16.mxu0 0
        %1219 = vmatpush1.bf16.msra.mxu0 0
        %1220 = vmatprep.subr.bf16.mxu0 0
        %1221 = vmatpush1.bf16.msra.mxu0 0
        %1222 = vmatprep.subr.bf16.mxu0 0
        %1223 = vmatpush1.bf16.msra.mxu0 0
        %1224 = vmatprep.subr.bf16.mxu0 0
        %1225 = vmatpush1.bf16.msra.mxu0 0
        %1226 = vmatprep.subr.bf16.mxu0 0
        %1227 = vmatpush1.bf16.msra.mxu0 0
        %1228 = vmatprep.subr.bf16.mxu0 0
        %1229 = vmatpush1.bf16.msra.mxu0 0
        %1230 = vmatprep.subr.bf16.mxu0 0
        %1231 = vmatpush1.bf16.msra.mxu0 0
        %1232 = vmatprep.subr.bf16.mxu0 0
        %1233 = vmatpush1.bf16.msra.mxu0 0
        %1234 = vmatprep.subr.bf16.mxu0 0
        %1235 = vmatpush1.bf16.msra.mxu0 0
        %1236 = vmatprep.subr.bf16.mxu0 0
        %1237 = vmatpush1.bf16.msra.mxu0 0
        %1238 = vmatprep.subr.bf16.mxu0 0
        %1239 = vmatpush1.bf16.msra.mxu0 0
        %1240 = vmatprep.subr.bf16.mxu0 0
        %1241 = vmatpush1.bf16.msra.mxu0 0
        %1242 = vmatprep.subr.bf16.mxu0 0
        %1243 = vmatpush1.bf16.msra.mxu0 0
        %1244 = vmatprep.subr.bf16.mxu0 0
        %1245 = vmatpush1.bf16.msra.mxu0 0
        %1246 = vmatprep.subr.bf16.mxu0 0
        %1247 = vmatpush1.bf16.msra.mxu0 0
        %1248 = vmatprep.mubr.bf16.mxu0 0
        %1249 = vmatmul.mubr.bf16.gmra.mrb[0].mxu0 %v1211
        %v1250 = vpop.f32.mrb[0].mxu0
        %v1251 = vadd.f32 0.0, %v1250
        %v1252 = vpop.f32.mrb[0].mxu0
        %v1253 = vpop.f32.mrb[0].mxu0
        %v1254 = vpop.f32.mrb[0].mxu0
        %1255 = vdwg.mxu0
        %1256 = vrot.lane.b32.xlu0 %v847, 48
        %v1257 = vpop.permute.xlu0 %1256
        %v1259 = vsel %vm959, %v1207, 0
        %v1262 = vsel %vm989, %v1257, 0
        %1264 = vmatprep.subr.bf16.mxu0 0
        %1265 = vmatpush1.bf16.msra.mxu0 %v1262
        %1266 = vmatprep.subr.bf16.mxu0 0
        %1267 = vmatpush1.bf16.msra.mxu0 0
        %1268 = vmatprep.subr.bf16.mxu0 0
        %1269 = vmatpush1.bf16.msra.mxu0 0
        %1270 = vmatprep.subr.bf16.mxu0 0
        %1271 = vmatpush1.bf16.msra.mxu0 0
        %1272 = vmatprep.subr.bf16.mxu0 0
        %1273 = vmatpush1.bf16.msra.mxu0 0
        %1274 = vmatprep.subr.bf16.mxu0 0
        %1275 = vmatpush1.bf16.msra.mxu0 0
        %1276 = vmatprep.subr.bf16.mxu0 0
        %1277 = vmatpush1.bf16.msra.mxu0 0
        %1278 = vmatprep.subr.bf16.mxu0 0
        %1279 = vmatpush1.bf16.msra.mxu0 0
        %1280 = vmatprep.subr.bf16.mxu0 0
        %1281 = vmatpush1.bf16.msra.mxu0 0
        %1282 = vmatprep.subr.bf16.mxu0 0
        %1283 = vmatpush1.bf16.msra.mxu0 0
        %1284 = vmatprep.subr.bf16.mxu0 0
        %1285 = vmatpush1.bf16.msra.mxu0 0
        %1286 = vmatprep.subr.bf16.mxu0 0
        %1287 = vmatpush1.bf16.msra.mxu0 0
        %1288 = vmatprep.subr.bf16.mxu0 0
        %1289 = vmatpush1.bf16.msra.mxu0 0
        %1290 = vmatprep.subr.bf16.mxu0 0
        %1291 = vmatpush1.bf16.msra.mxu0 0
        %1292 = vmatprep.subr.bf16.mxu0 0
        %1293 = vmatpush1.bf16.msra.mxu0 0
        %1294 = vmatprep.subr.bf16.mxu0 0
        %1295 = vmatpush1.bf16.msra.mxu0 0
        %1296 = vmatprep.mubr.bf16.mxu0 0
        %1297 = vmatmul.mubr.bf16.gmra.mrb[0].mxu0 %v1259
        %v1298 = vpop.f32.mrb[0].mxu0
        %v1299 = vadd.f32 0.0, %v1298
        %v1300 = vpop.f32.mrb[0].mxu0
        %v1301 = vpop.f32.mrb[0].mxu0
        %v1302 = vpop.f32.mrb[0].mxu0
        %1303 = vdwg.mxu0
        %v1304 = vpack.c.bf16 %v1299, %v1251
        %v1305 = vld [vmem:[%s740 + $0x8] sm:$0xf]
        %v1306 = vld [vmem:[%s740 + $0xc] sm:$0xf]
        %v1309 = vunpack.c.l.b16 %v1305
        %v1310 = vunpack.c.l.b16 %v1306
        %v1311 = vpack.c.b16 %v1310, %v1309
        %v1314 = vsel %vm863, %v1304, 0
        %1316 = vmatprep.subr.bf16.mxu0 0
        %1317 = vmatpush1.bf16.msra.mxu0 %v1311
        %1318 = vmatprep.subr.bf16.mxu0 0
        %1319 = vmatpush1.bf16.msra.mxu0 0
        %1320 = vmatprep.subr.bf16.mxu0 0
        %1321 = vmatpush1.bf16.msra.mxu0 0
        %1322 = vmatprep.subr.bf16.mxu0 0
        %1323 = vmatpush1.bf16.msra.mxu0 0
        %1324 = vmatprep.subr.bf16.mxu0 0
        %1325 = vmatpush1.bf16.msra.mxu0 0
        %1326 = vmatprep.subr.bf16.mxu0 0
        %1327 = vmatpush1.bf16.msra.mxu0 0
        %1328 = vmatprep.subr.bf16.mxu0 0
        %1329 = vmatpush1.bf16.msra.mxu0 0
        %1330 = vmatprep.subr.bf16.mxu0 0
        %1331 = vmatpush1.bf16.msra.mxu0 0
        %1332 = vmatprep.subr.bf16.mxu0 0
        %1333 = vmatpush1.bf16.msra.mxu0 0
        %1334 = vmatprep.subr.bf16.mxu0 0
        %1335 = vmatpush1.bf16.msra.mxu0 0
        %1336 = vmatprep.subr.bf16.mxu0 0
        %1337 = vmatpush1.bf16.msra.mxu0 0
        %1338 = vmatprep.subr.bf16.mxu0 0
        %1339 = vmatpush1.bf16.msra.mxu0 0
        %1340 = vmatprep.subr.bf16.mxu0 0
        %1341 = vmatpush1.bf16.msra.mxu0 0
        %1342 = vmatprep.subr.bf16.mxu0 0
        %1343 = vmatpush1.bf16.msra.mxu0 0
        %1344 = vmatprep.subr.bf16.mxu0 0
        %1345 = vmatpush1.bf16.msra.mxu0 0
        %1346 = vmatprep.subr.bf16.mxu0 0
        %1347 = vmatpush1.bf16.msra.mxu0 0
        %1348 = vmatprep.mubr.bf16.mxu0 0
        %1349 = vmatmul.mubr.bf16.gmra.mrb[0].mxu0 %v1314
        %v1350 = vpop.f32.mrb[0].mxu0
        %v1351 = vadd.f32 0.0, %v1350
        %v1352 = vpop.f32.mrb[0].mxu0
        %v1353 = vpop.f32.mrb[0].mxu0
        %v1354 = vadd.f32 0.0, %v1353
        %v1355 = vpop.f32.mrb[0].mxu0
        %1356 = vdwg.mxu0
        %v1359 = vunpack.c.l.b16 %v1082
        %v1360 = vunpack.c.l.b16 %v1083
        %v1361 = vpack.c.b16 %v1360, %v1359
        %v1364 = vsel %vm863, %v1081, 0
        %1366 = vmatprep.subr.bf16.mxu0 0
        %1367 = vmatpush1.bf16.msra.mxu0 %v1361
        %1368 = vmatprep.subr.bf16.mxu0 0
        %1369 = vmatpush1.bf16.msra.mxu0 0
        %1370 = vmatprep.subr.bf16.mxu0 0
        %1371 = vmatpush1.bf16.msra.mxu0 0
        %1372 = vmatprep.subr.bf16.mxu0 0
        %1373 = vmatpush1.bf16.msra.mxu0 0
        %1374 = vmatprep.subr.bf16.mxu0 0
        %1375 = vmatpush1.bf16.msra.mxu0 0
        %1376 = vmatprep.subr.bf16.mxu0 0
        %1377 = vmatpush1.bf16.msra.mxu0 0
        %1378 = vmatprep.subr.bf16.mxu0 0
        %1379 = vmatpush1.bf16.msra.mxu0 0
        %1380 = vmatprep.subr.bf16.mxu0 0
        %1381 = vmatpush1.bf16.msra.mxu0 0
        %1382 = vmatprep.subr.bf16.mxu0 0
        %1383 = vmatpush1.bf16.msra.mxu0 0
        %1384 = vmatprep.subr.bf16.mxu0 0
        %1385 = vmatpush1.bf16.msra.mxu0 0
        %1386 = vmatprep.subr.bf16.mxu0 0
        %1387 = vmatpush1.bf16.msra.mxu0 0
        %1388 = vmatprep.subr.bf16.mxu0 0
        %1389 = vmatpush1.bf16.msra.mxu0 0
        %1390 = vmatprep.subr.bf16.mxu0 0
        %1391 = vmatpush1.bf16.msra.mxu0 0
        %1392 = vmatprep.subr.bf16.mxu0 0
        %1393 = vmatpush1.bf16.msra.mxu0 0
        %1394 = vmatprep.subr.bf16.mxu0 0
        %1395 = vmatpush1.bf16.msra.mxu0 0
        %1396 = vmatprep.subr.bf16.mxu0 0
        %1397 = vmatpush1.bf16.msra.mxu0 0
        %1398 = vmatprep.mubr.bf16.mxu0 0
        %1399 = vmatmul.mubr.bf16.gmra.mrb[0].mxu0 %v1364
        %v1400 = vpop.f32.mrb[0].mxu0
        %v1401 = vadd.f32 %v1351, %v1400
        %v1402 = vpop.f32.mrb[0].mxu0
        %v1403 = vpop.f32.mrb[0].mxu0
        %v1404 = vadd.f32 %v1354, %v1403
        %v1405 = vpop.f32.mrb[0].mxu0
        %1406 = vdwg.mxu0
        %v1407 = vld [vmem:[%s611] sm:$0x1]
        %v1409 = vlaneseq
        %v1410 = vshrl.u32 %v1409, 7
        %v1411 = vsub.s32 0, %v1410
        %v1412 = vrot.slane %v1407, %v1411
        %v1414 = vadd.f32 %v1401, %v1412
        %v1415 = vadd.f32 %v1404, %v1412
        %v1416 = vadd.f32 %v773, %v1414
        %v1417 = vadd.f32 %v774, %v1415
        %v1418 = vld [vmem:[%s619] sm:$0x1]
        %v1419 = vld [vmem:[%s627] sm:$0x1]
        %v1420 = vsel %vm799, %v1416, 0.0
        %1421 = vadd.xlane.f32.xlu0 %v1420
        %v1422 = vpop.xlane.xlu0 %1421
        %v1423 = vsel %vm799, %v1417, 0.0
        %1424 = vadd.xlane.f32.xlu0 %v1423
        %v1425 = vpop.xlane.xlu0 %1424
        %v1426 = vrcp.pop 32.0
        %v1427 = vmul.f32 %v1422, %v1426
        %v1428 = vmul.f32 %v1425, %v1426
        %v1429 = vsub.f32 %v1416, %v1427
        %v1430 = vsub.f32 %v1417, %v1428
        %v1431 = vmul.f32 %v1429, %v1429
        %v1432 = vmul.f32 %v1430, %v1430
        %v1433 = vsel %vm799, %v1431, 0.0
        %1434 = vadd.xlane.f32.xlu0 %v1433
        %v1435 = vpop.xlane.xlu0 %1434
        %v1436 = vsel %vm799, %v1432, 0.0
        %1437 = vadd.xlane.f32.xlu0 %v1436
        %v1438 = vpop.xlane.xlu0 %1437
        %v1439 = vmul.f32 %v1435, %v1426
        %v1440 = vmul.f32 %v1438, %v1426
        %v1441 = vadd.f32 %v1439, 1e-12
        %v1442 = vadd.f32 %v1440, 1e-12
        %v1443 = vrsqrt.pop %v1441
        %v1444 = vrsqrt.pop %v1442
        %v1445 = vmul.f32 %v1429, %v1443
        %v1446 = vmul.f32 %v1430, %v1444
        %v1448 = vlaneseq
        %v1449 = vshrl.u32 %v1448, 7
        %v1450 = vsub.s32 0, %v1449
        %v1451 = vrot.slane %v1418, %v1450
        %v1453 = vmul.f32 %v1445, %v1451
        %v1454 = vmul.f32 %v1446, %v1451
        %v1456 = vlaneseq
        %v1457 = vshrl.u32 %v1456, 7
        %v1458 = vsub.s32 0, %v1457
        %v1459 = vrot.slane %v1419, %v1458
        %v1461 = vadd.f32 %v1453, %v1459
        %v1462 = vadd.f32 %v1454, %v1459
        %v1463 = vpack.c.bf16 %v1462, %v1461
        %v1464 = vld [vmem:[%s745] sm:$0xf]
        %v1465 = vld [vmem:[%s745 + $0x4] sm:$0xf]
        %v1466 = vld [vmem:[%s745 + $0x8] sm:$0xf]
        %v1467 = vld [vmem:[%s745 + $0xc] sm:$0xf]
        %v1468 = vld [vmem:[%s635] sm:$0x1]
        %v1469 = vld [vmem:[%s750] sm:$0xf]
        %v1470 = vld [vmem:[%s750 + $0x4] sm:$0xf]
        %v1471 = vld [vmem:[%s750 + $0x8] sm:$0xf]
        %v1472 = vld [vmem:[%s750 + $0xc] sm:$0xf]
        %v1473 = vld [vmem:[%s750 + $0x10] sm:$0xf]
        %v1474 = vld [vmem:[%s750 + $0x14] sm:$0xf]
        %v1475 = vld [vmem:[%s750 + $0x18] sm:$0xf]
        %v1476 = vld [vmem:[%s750 + $0x1c] sm:$0xf]
        %v1478 = vlaneseq
        %v1479 = vshrl.u32 %v1478, 7
        %v1480 = vsub.s32 0, %v1479
        %v1481 = vrot.slane %v1468, %v1480
        %v1487 = vunpack.c.l.b16 %v1464
        %v1488 = vunpack.c.l.b16 %v1465
        %v1489 = vunpack.c.l.b16 %v1466
        %v1490 = vunpack.c.l.b16 %v1467
        %v1491 = vpack.c.b16 %v1488, %v1487
        %v1492 = vpack.c.b16 %v1490, %v1489
        %v1496 = vsel %vm799, %v1463, 0
        %1498 = vmatprep.subr.bf16.mxu0 0
        %1499 = vmatpush1.bf16.msra.mxu0 %v1491
        %1500 = vmatprep.subr.bf16.mxu0 0
        %1501 = vmatpush1.bf16.msra.mxu0 %v1492
        %1502 = vmatprep.subr.bf16.mxu0 0
        %1503 = vmatpush1.bf16.msra.mxu0 0
        %1504 = vmatprep.subr.bf16.mxu0 0
        %1505 = vmatpush1.bf16.msra.mxu0 0
        %1506 = vmatprep.subr.bf16.mxu0 0
        %1507 = vmatpush1.bf16.msra.mxu0 0
        %1508 = vmatprep.subr.bf16.mxu0 0
        %1509 = vmatpush1.bf16.msra.mxu0 0
        %1510 = vmatprep.subr.bf16.mxu0 0
        %1511 = vmatpush1.bf16.msra.mxu0 0
        %1512 = vmatprep.subr.bf16.mxu0 0
        %1513 = vmatpush1.bf16.msra.mxu0 0
        %1514 = vmatprep.subr.bf16.mxu0 0
        %1515 = vmatpush1.bf16.msra.mxu0 0
        %1516 = vmatprep.subr.bf16.mxu0 0
        %1517 = vmatpush1.bf16.msra.mxu0 0
        %1518 = vmatprep.subr.bf16.mxu0 0
        %1519 = vmatpush1.bf16.msra.mxu0 0
        %1520 = vmatprep.subr.bf16.mxu0 0
        %1521 = vmatpush1.bf16.msra.mxu0 0
        %1522 = vmatprep.subr.bf16.mxu0 0
        %1523 = vmatpush1.bf16.msra.mxu0 0
        %1524 = vmatprep.subr.bf16.mxu0 0
        %1525 = vmatpush1.bf16.msra.mxu0 0
        %1526 = vmatprep.subr.bf16.mxu0 0
        %1527 = vmatpush1.bf16.msra.mxu0 0
        %1528 = vmatprep.subr.bf16.mxu0 0
        %1529 = vmatpush1.bf16.msra.mxu0 0
        %1530 = vmatprep.mubr.bf16.mxu0 0
        %1531 = vmatmul.mubr.bf16.gmra.mrb[0].mxu0 %v1496
        %v1532 = vpop.f32.mrb[0].mxu0
        %v1533 = vadd.f32 %v1481, %v1532
        %v1534 = vpop.f32.mrb[0].mxu0
        %v1535 = vpop.f32.mrb[0].mxu0
        %v1536 = vadd.f32 %v1481, %v1535
        %v1537 = vpop.f32.mrb[0].mxu0
        %1538 = vdwg.mxu0
        %v1539 = vmul.f32 %v1533, 0.5
        %v1540 = vmul.f32 %v1536, 0.5
        %v1541 = vmul.f32 %v1533, 0.044715
        %v1542 = vmul.f32 %v1536, 0.044715
        %v1543 = vmul.f32 %v1541, %v1533
        %v1544 = vmul.f32 %v1542, %v1536
        %v1545 = vmul.f32 %v1543, %v1533
        %v1546 = vmul.f32 %v1544, %v1536
        %v1547 = vadd.f32 %v1533, %v1545
        %v1548 = vadd.f32 %v1536, %v1546
        %v1549 = vmul.f32 %v1547, 0.7978846
        %v1550 = vmul.f32 %v1548, 0.7978846
        %v1551 = vtanh.pop %v1549
        %v1552 = vtanh.pop %v1550
        %v1553 = vadd.f32 %v1551, 1.0
        %v1554 = vadd.f32 %v1552, 1.0
        %v1555 = vmul.f32 %v1539, %v1553
        %v1556 = vmul.f32 %v1540, %v1554
        %v1557 = vpack.c.bf16 %v1556, %v1555
        %v1566 = vunpack.c.l.b16 %v1469
        %v1567 = vunpack.c.l.b16 %v1470
        %v1568 = vunpack.c.l.b16 %v1471
        %v1569 = vunpack.c.l.b16 %v1472
        %v1570 = vunpack.c.l.b16 %v1473
        %v1571 = vunpack.c.l.b16 %v1474
        %v1572 = vunpack.c.l.b16 %v1475
        %v1573 = vunpack.c.l.b16 %v1476
        %v1574 = vpack.c.b16 %v1567, %v1566
        %v1575 = vpack.c.b16 %v1569, %v1568
        %v1576 = vpack.c.b16 %v1571, %v1570
        %v1577 = vpack.c.b16 %v1573, %v1572
        %vm1582 = vcmask 523264
        %v1584 = vsel %vm1582, %v1557, 0
        %1586 = vmatprep.subr.bf16.mxu0 0
        %1587 = vmatpush1.bf16.msra.mxu0 %v1574
        %1588 = vmatprep.subr.bf16.mxu0 0
        %1589 = vmatpush1.bf16.msra.mxu0 %v1575
        %1590 = vmatprep.subr.bf16.mxu0 0
        %1591 = vmatpush1.bf16.msra.mxu0 %v1576
        %1592 = vmatprep.subr.bf16.mxu0 0
        %1593 = vmatpush1.bf16.msra.mxu0 %v1577
        %1594 = vmatprep.subr.bf16.mxu0 0
        %1595 = vmatpush1.bf16.msra.mxu0 0
        %1596 = vmatprep.subr.bf16.mxu0 0
        %1597 = vmatpush1.bf16.msra.mxu0 0
        %1598 = vmatprep.subr.bf16.mxu0 0
        %1599 = vmatpush1.bf16.msra.mxu0 0
        %1600 = vmatprep.subr.bf16.mxu0 0
        %1601 = vmatpush1.bf16.msra.mxu0 0
        %1602 = vmatprep.subr.bf16.mxu0 0
        %1603 = vmatpush1.bf16.msra.mxu0 0
        %1604 = vmatprep.subr.bf16.mxu0 0
        %1605 = vmatpush1.bf16.msra.mxu0 0
        %1606 = vmatprep.subr.bf16.mxu0 0
        %1607 = vmatpush1.bf16.msra.mxu0 0
        %1608 = vmatprep.subr.bf16.mxu0 0
        %1609 = vmatpush1.bf16.msra.mxu0 0
        %1610 = vmatprep.subr.bf16.mxu0 0
        %1611 = vmatpush1.bf16.msra.mxu0 0
        %1612 = vmatprep.subr.bf16.mxu0 0
        %1613 = vmatpush1.bf16.msra.mxu0 0
        %1614 = vmatprep.subr.bf16.mxu0 0
        %1615 = vmatpush1.bf16.msra.mxu0 0
        %1616 = vmatprep.subr.bf16.mxu0 0
        %1617 = vmatpush1.bf16.msra.mxu0 0
        %1618 = vmatprep.mubr.bf16.mxu0 0
        %1619 = vmatmul.mubr.bf16.gmra.mrb[0].mxu0 %v1584
        %v1620 = vpop.f32.mrb[0].mxu0
        %v1621 = vadd.f32 0.0, %v1620
        %v1622 = vpop.f32.mrb[0].mxu0
        %v1623 = vpop.f32.mrb[0].mxu0
        %v1624 = vadd.f32 0.0, %v1623
        %v1625 = vpop.f32.mrb[0].mxu0
        %1626 = vdwg.mxu0
        %v1627 = vadd.f32 %v1461, %v1621
        %v1628 = vadd.f32 %v1462, %v1624
        %v1629 = vld [vmem:[%s753] sm:$0x1]
        %v1631 = vlaneseq
        %v1632 = vshrl.u32 %v1631, 7
        %v1633 = vsub.s32 0, %v1632
        %v1634 = vrot.slane %v1629, %v1633
        %v1636 = vadd.f32 %v1627, %v1634
        %v1637 = vadd.f32 %v1628, %v1634
        %v1638 = vld [vmem:[%s756] sm:$0x1]
        %v1639 = vld [vmem:[%s759] sm:$0x1]
        %v1640 = vsel %vm799, %v1636, 0.0
        %1641 = vadd.xlane.f32.xlu0 %v1640
        %v1642 = vpop.xlane.xlu0 %1641
        %v1643 = vsel %vm799, %v1637, 0.0
        %1644 = vadd.xlane.f32.xlu0 %v1643
        %v1645 = vpop.xlane.xlu0 %1644
        %v1646 = vmul.f32 %v1642, %v1426
        %v1647 = vmul.f32 %v1645, %v1426
        %v1648 = vsub.f32 %v1636, %v1646
        %v1649 = vsub.f32 %v1637, %v1647
        %v1650 = vmul.f32 %v1648, %v1648
        %v1651 = vmul.f32 %v1649, %v1649
        %v1652 = vsel %vm799, %v1650, 0.0
        %1653 = vadd.xlane.f32.xlu0 %v1652
        %v1654 = vpop.xlane.xlu0 %1653
        %v1655 = vsel %vm799, %v1651, 0.0
        %1656 = vadd.xlane.f32.xlu0 %v1655
        %v1657 = vpop.xlane.xlu0 %1656
        %v1658 = vmul.f32 %v1654, %v1426
        %v1659 = vmul.f32 %v1657, %v1426
        %v1660 = vadd.f32 %v1658, 1e-12
        %v1661 = vadd.f32 %v1659, 1e-12
        %v1662 = vrsqrt.pop %v1660
        %v1663 = vrsqrt.pop %v1661
        %v1664 = vmul.f32 %v1648, %v1662
        %v1665 = vmul.f32 %v1649, %v1663
        %v1667 = vlaneseq
        %v1668 = vshrl.u32 %v1667, 7
        %v1669 = vsub.s32 0, %v1668
        %v1670 = vrot.slane %v1638, %v1669
        %v1672 = vmul.f32 %v1664, %v1670
        %v1673 = vmul.f32 %v1665, %v1670
        %v1675 = vlaneseq
        %v1676 = vshrl.u32 %v1675, 7
        %v1677 = vsub.s32 0, %v1676
        %v1678 = vrot.slane %v1639, %v1677
        %v1680 = vadd.f32 %v1672, %v1678
        %v1681 = vadd.f32 %v1673, %v1678
        %1682 = vst.msk [vmem:[#allocation2] sm:$0xff] %vm799, %v1680
        %1683 = vst.msk [vmem:[#allocation2 + $0x8] sm:$0xff] %vm799, %v1681
        %p1684 = scmp.eq.s32.totalorder %s38, 1
        // Predicated region
        $region101: #{tpu_custom_call.1} parent=75 // pred_check
          %p1685 = pneg %p1684
        $region102: #{tpu_custom_call.1} parent=75 // pred_check_branch
          %1687 = sbr.rel (%p1685) target = $region104
        $region103: #{tpu_custom_call.1} parent=75 // pred_region
          %vm1688 = vcmask 253952
          %1689 = vst.msk [vmem:[#allocation12] sm:$0x1] %vm1688, %v1680
          %1690 = vst.msk [vmem:[#allocation12 + $0x1] sm:$0x1] %vm1688, %v1681
        $region104: #{tpu_custom_call.1} parent=75 // pred_fallthru
          _
        // Predicated region
        $region105: #{tpu_custom_call.1} parent=75 // pred_check
          %p1691 = pneg %p427
        $region106: #{tpu_custom_call.1} parent=75 // pred_check_branch
          %1693 = sbr.rel (%p1691) target = $region108
        $region107: #{tpu_custom_call.1} parent=75 // pred_region
          %s1694 = smul.u32 2, %s37
          %s1696 = ssub.s32 32, 32
          %1697 = vsyncadd [#allocation5], %s1696
          %s1698 = smul.addr %s1694, 16
          %s1699 = scalar_lea.hbm %s14, %s1698
          %s1700 = sshll.u32 [#allocation12], 4
          %s1701 = int_to_ptr.vmem [resolvable:$true] %s1700
          %1706 = dma.vmem_to_hbm [thread:$0]  %s1701, 32, %s1699, [#allocation5], 16, 16, 1
        $region108: #{tpu_custom_call.1} parent=75 // pred_fallthru
          _
        // Predicated region
        $region109: #{tpu_custom_call.1} parent=75 // pred_check
          %p1707 = pneg %p427
        $region110: #{tpu_custom_call.1} parent=75 // pred_check_branch
          %1709 = sbr.rel (%p1707) target = $region112
        $region111: #{tpu_custom_call.1} parent=75 // pred_region
          %1710 = dma.done [#allocation5], 32
        $region112: #{tpu_custom_call.1} parent=75 // pred_fallthru
          _
      $region76: #{tpu_custom_call.1} parent=5 // pred_fallthru
        _
      %p1711 = scmp.le.s32.totalorder 2, %s28
      // Predicated region
      $region113: #{tpu_custom_call.1} parent=5 // pred_check
        %p1712 = pneg %p1711
      $region114: #{tpu_custom_call.1} parent=5 // pred_check_branch
        %1714 = sbr.rel (%p1712) target = $region116
      $region115: #{tpu_custom_call.1} parent=5 // pred_region
        %s1715 = ssub.s32 %s28, 2
      $region116: #{tpu_custom_call.1} parent=5 // pred_fallthru
        _
    $region6: #{tpu_custom_call.1} parent=1 // loop_footer
      %s32 = sadd.s32 1, %s28
    $region7: #{tpu_custom_call.1} parent=1 // loop_footer_branch
      %27 = sbr.rel target = $region3
    $region8: #{tpu_custom_call.1} parent=1 // loop_exit
      _
    %1716 = vsyncpa [#allocation4], 1
    %s1717 = scalar_lea.sflag [#allocation4], 1
    %1718 = vsyncpa %s1717, 1
    %1719 = vsyncpa [#allocation7], 1
    %s1720 = scalar_lea.sflag [#allocation7], 1
    %1721 = vsyncpa %s1720, 1
    %1722 = vsyncpa [#allocation10], 1
    %s1723 = scalar_lea.sflag [#allocation10], 1
    %1724 = vsyncpa %s1723, 1
    %1725 = vsyncpa [#allocation5], 1
    %s1726 = scalar_lea.sflag [#allocation5], 1
    %1727 = vsyncpa %s1726, 1

</llo_original>
